<compile_context>
chip_gen: v7x
topology: tpu7x:2x2x1
jax: 0.10.0
libtpu: 0.0.40
codegen_flags: <defaults>
</compile_context>

<pallas_src>
import functools

import jax
import jax.numpy as jnp
from jax.experimental import pallas as pl
from jax.experimental.pallas import tpu as pltpu

_LANE = 128     # TPU lane width
_SUBLANE = 8    # f32 / int32 sublane count


def _mlp_predict_kernel(x_ref, w0_ref, b0_ref, w1_ref, b1_ref, w2t_ref, b2_ref,
                        classes_ref, label_ref):
    """Fused 3-layer MLP + argmax + class lookup for one batch tile.

    x_ref:       (TB, d_in)    f32   (cast to bf16 in-kernel)
    w0_ref:      (d_in, 128)   bf16    b0_ref: (1, 128)   f32
    w1_ref:      (128, 128)    bf16    b1_ref: (1, 128)   f32
    w2t_ref:     (C_pad, 128)  bf16  (transposed output weight: [class, hidden])
    b2_ref:      (C_pad, 1)    f32   (padded classes hold -1e30)
    classes_ref: (C_pad, 1)    int32 (class labels)
    label_ref:   (1, TB)       int32 (lane-dense label row)
    """
    # Cast x to bf16 here (keeps x HBM traffic to a single f32 read; MXU takes bf16).
    x = x_ref[...].astype(jnp.bfloat16)

    # Hidden layers: Linear + ReLU, bf16 MXU inputs, f32 accumulation.
    h = jnp.dot(x, w0_ref[...], preferred_element_type=jnp.float32) + b0_ref[...]
    h = jnp.maximum(h, 0.0).astype(jnp.bfloat16)

    h = jnp.dot(h, w1_ref[...], preferred_element_type=jnp.float32) + b1_ref[...]
    h = jnp.maximum(h, 0.0).astype(jnp.bfloat16)

    # Output layer computed transposed: logits_t[c, t] = sum_h w2t[c, h] * h[t, h] + b2[c].
    # NT contraction keeps batch on lanes so the int32 label row comes out lane-dense;
    # only C_pad (<=8 here) class sublanes are carried through the epilogue.
    logits_t = jax.lax.dot_general(
        w2t_ref[...], h,
        dimension_numbers=(((1,), (1,)), ((), ())),
        preferred_element_type=jnp.float32,
    ) + b2_ref[...]                                             # (C_pad, TB)

    # argmax over classes (sublane reductions), first-index tie-break like torch.argmax.
    # All bookkeeping in int32; single equality mask. (softmax/exp skipped: monotone.)
    # NOTE: a row of all-NaN logits would fall through to label classes_[0] here, whereas
    # torch.argmax would pick the first NaN index — edge case only.
    c_pad = logits_t.shape[0]
    m = jnp.max(logits_t, axis=0, keepdims=True)                # (1, TB)
    mask = logits_t == m
    ci = jax.lax.broadcasted_iota(jnp.int32, logits_t.shape, 0)
    idx = jnp.min(jnp.where(mask, ci, c_pad), axis=0, keepdims=True)   # (1, TB) int32

    # classes_[idx] via one-hot int32 select + sum (no dynamic gather needed).
    classes_b = jnp.broadcast_to(classes_ref[...], logits_t.shape)
    label = jnp.sum(jnp.where(ci == idx, classes_b, 0), axis=0, keepdims=True)
    label_ref[...] = label


def prepare_mlp_params(w0, b0, w1, b1, w2, b2, classes):
    """One-time padding/casting of the MLP parameters (sklearn coefs_ layout: [in, out]).

    Returns padded tensors ready for mlp_classifier_predict_padded; call once per model,
    not per predict() call.
    """
    f32, bf16, i32 = jnp.float32, jnp.bfloat16, jnp.int32
    d_in, h0 = w0.shape
    h1, n_classes = w1.shape[1], w2.shape[1]
    # TODO(synk): tile the hidden dims if they exceed the 128-lane width.
    assert max(h0, h1) <= _LANE
    # Class dim padded only to the next sublane multiple (8), not 128.
    c_pad = max(_SUBLANE, ((n_classes + _SUBLANE - 1) // _SUBLANE) * _SUBLANE)
    assert c_pad <= _LANE

    w0p = jnp.zeros((d_in, _LANE), bf16).at[:, :h0].set(w0.astype(bf16))
    b0p = jnp.zeros((1, _LANE), f32).at[0, :h0].set(b0.reshape(-1).astype(f32))
    w1p = jnp.zeros((_LANE, _LANE), bf16).at[:h0, :h1].set(w1.astype(bf16))
    b1p = jnp.zeros((1, _LANE), f32).at[0, :h1].set(b1.reshape(-1).astype(f32))
    # Output layer stored transposed ([class, hidden]); padded classes get a -1e30 bias so
    # they can never win the argmax.
    w2tp = jnp.zeros((c_pad, _LANE), bf16).at[:n_classes, :h1].set(w2.T.astype(bf16))
    b2p = jnp.full((c_pad, 1), -1e30, f32).at[:n_classes, 0].set(b2.reshape(-1).astype(f32))
    classes_p = jnp.zeros((c_pad, 1), i32).at[:n_classes, 0].set(
        classes.reshape(-1).astype(i32))
    return w0p, b0p, w1p, b1p, w2tp, b2p, classes_p


@functools.partial(jax.jit, static_argnames=("tb",))
def mlp_classifier_predict_padded(x, w0p, b0p, w1p, b1p, w2tp, b2p, classes_p, *, tb=1024):
    """TorchMLPClassifier.predict on pre-padded params: returns int32 labels, shape (batch,)."""
    assert tb % _LANE == 0, "batch tile must be a multiple of the 128-lane width"
    batch, d_in = x.shape
    c_pad = w2tp.shape[0]

    # Pad batch to a multiple of the tile (no-op when batch % tb == 0; the padded rows'
    # labels are sliced off below).
    # TODO(synk): mask the ragged last tile in-kernel instead of padding if ragged
    # batches are the common case.
    b_pad = ((batch + tb - 1) // tb) * tb
    xp = x if b_pad == batch else jnp.pad(x, ((0, b_pad - batch), (0, 0)))

    flops = 2 * b_pad * (d_in * _LANE + _LANE * _LANE + _LANE * c_pad)
    bytes_accessed = (xp.size * 4
                      + (w0p.size + w1p.size + w2tp.size) * 2
                      + (b0p.size + b1p.size + b2p.size) * 4
                      + classes_p.size * 4
                      + b_pad * 4)

    labels = pl.pallas_call(
        _mlp_predict_kernel,
        out_shape=jax.ShapeDtypeStruct((1, b_pad), jnp.int32),
        grid=(b_pad // tb,),
        in_specs=[
            pl.BlockSpec((tb, d_in), lambda i: (i, 0)),      # x: new batch tile per step
            pl.BlockSpec((d_in, _LANE), lambda i: (0, 0)),   # weights/biases/classes stay
            pl.BlockSpec((1, _LANE), lambda i: (0, 0)),      # resident in VMEM
            pl.BlockSpec((_LANE, _LANE), lambda i: (0, 0)),
            pl.BlockSpec((1, _LANE), lambda i: (0, 0)),
            pl.BlockSpec((c_pad, _LANE), lambda i: (0, 0)),
            pl.BlockSpec((c_pad, 1), lambda i: (0, 0)),
            pl.BlockSpec((c_pad, 1), lambda i: (0, 0)),
        ],
        out_specs=pl.BlockSpec((1, tb), lambda i: (0, i)),   # lane-dense label row
        compiler_params=pltpu.CompilerParams(
            dimension_semantics=("parallel",),
            vmem_limit_bytes=32 * 1024 * 1024,
        ),
        cost_estimate=pl.CostEstimate(flops=flops, transcendentals=0,
                                      bytes_accessed=bytes_accessed),
    )(xp, w0p, b0p, w1p, b1p, w2tp, b2p, classes_p)

    return labels[0, :batch]


def mlp_classifier_predict(x, w0, b0, w1, b1, w2, b2, classes, *, tb=1024):
    """Convenience wrapper: pads params (do this once per model in real use) then predicts."""
    padded = prepare_mlp_params(w0, b0, w1, b1, w2, b2, classes)
    return mlp_classifier_predict_padded(x, *padded, tb=tb)


def _reference_predict(x, w0, b0, w1, b1, w2, b2, classes):
    """Pure-JAX reference with matching numerics (bf16 matmul inputs, f32 accumulation)."""
    bf16, f32 = jnp.bfloat16, jnp.float32
    h = jnp.dot(x.astype(bf16), w0.astype(bf16), preferred_element_type=f32) + b0.reshape(1, -1)
    h = jnp.maximum(h, 0.0)
    h = jnp.dot(h.astype(bf16), w1.astype(bf16), preferred_element_type=f32) + b1.reshape(1, -1)
    h = jnp.maximum(h, 0.0)
    logits = jnp.dot(h.astype(bf16), w2.astype(bf16), preferred_element_type=f32) + b2.reshape(1, -1)
    # Original module semantics: probs = exp(log_softmax(logits)); labels = classes_[argmax].
    probs = jnp.exp(jax.nn.log_softmax(logits, axis=-1))
    return classes.reshape(-1)[jnp.argmax(probs, axis=-1)].astype(jnp.int32)


if __name__ == "__main__":
    # 32 input features, hidden layers (64, 32), 8 classes, batch 2048 -> grid of 2 tiles
    # of 1024 (>= 2 tiles so v7x's two TensorCores both get work).
    batch, d_in, d_h0, d_h1, n_classes = 2048, 32, 64, 32, 8

    key = jax.random.PRNGKey(0)
    kx, k0, k1, k2, kb0, kb1, kb2 = jax.random.split(key, 7)

    x = jax.random.normal(kx, (batch, d_in), dtype=jnp.float32)
    # sklearn coefs_ layout: [in_features, out_features]
    w0 = jax.random.normal(k0, (d_in, d_h0), dtype=jnp.float32) * 0.2
    w1 = jax.random.normal(k1, (d_h0, d_h1), dtype=jnp.float32) * 0.2
    w2 = jax.random.normal(k2, (d_h1, n_classes), dtype=jnp.float32) * 0.2
    b0 = jax.random.normal(kb0, (d_h0,), dtype=jnp.float32) * 0.1
    b1 = jax.random.normal(kb1, (d_h1,), dtype=jnp.float32) * 0.1
    b2 = jax.random.normal(kb2, (n_classes,), dtype=jnp.float32) * 0.1

    # TorchLabelBinarizer classes_ (identity mapping 0..n_classes-1 here)
    classes = jnp.arange(n_classes, dtype=jnp.int32)

    # Pad/cast the model params once, then run the jitted predict.
    padded = prepare_mlp_params(w0, b0, w1, b1, w2, b2, classes)
    labels = mlp_classifier_predict_padded(x, *padded, tb=1024)
    labels = jax.block_until_ready(labels)

    ref = _reference_predict(x, w0, b0, w1, b1, w2, b2, classes)
    assert labels.shape == (batch,)
    assert labels.dtype == jnp.int32
    assert jnp.all(labels == ref), (labels, ref)

    print("KERNEL_OK")
</pallas_src>

<mosaic_0001>
module attributes {stable_mosaic.version = 11 : i64} {
  func.func @_mlp_predict_kernel(%arg0: i32, %arg1: memref<1024x32xf32, #tpu.memory_space<vmem>>, %arg2: memref<32x128xbf16, #tpu.memory_space<vmem>>, %arg3: memref<1x128xf32, #tpu.memory_space<vmem>>, %arg4: memref<128x128xbf16, #tpu.memory_space<vmem>>, %arg5: memref<1x128xf32, #tpu.memory_space<vmem>>, %arg6: memref<8x128xbf16, #tpu.memory_space<vmem>>, %arg7: memref<8x1xf32, #tpu.memory_space<vmem>>, %arg8: memref<8x1xi32, #tpu.memory_space<vmem>>, %arg9: memref<1x1024xi32, #tpu.memory_space<vmem>>) attributes {dimension_semantics = [#tpu.dimension_semantics<parallel>], iteration_bounds = array<i64: 2>, scalar_prefetch = 0 : i64, scratch_operands = 0 : i64, tpu.core_type = #tpu.core_type<tc>, window_params = [{transform_indices = @transform_0, window_bounds = array<i64: 1024, 32>}, {pipeline_mode = #tpu.pipeline_mode<synchronous>, transform_indices = @transform_1, window_bounds = array<i64: 32, 128>}, {pipeline_mode = #tpu.pipeline_mode<synchronous>, transform_indices = @transform_2, window_bounds = array<i64: 1, 128>}, {pipeline_mode = #tpu.pipeline_mode<synchronous>, transform_indices = @transform_3, window_bounds = array<i64: 128, 128>}, {pipeline_mode = #tpu.pipeline_mode<synchronous>, transform_indices = @transform_4, window_bounds = array<i64: 1, 128>}, {pipeline_mode = #tpu.pipeline_mode<synchronous>, transform_indices = @transform_5, window_bounds = array<i64: 8, 128>}, {pipeline_mode = #tpu.pipeline_mode<synchronous>, transform_indices = @transform_6, window_bounds = array<i64: 8, 1>}, {pipeline_mode = #tpu.pipeline_mode<synchronous>, transform_indices = @transform_7, window_bounds = array<i64: 8, 1>}, {transform_indices = @transform_8, window_bounds = array<i64: 1, 1024>}]} {
    %c0 = arith.constant 0 : index
    %c0_0 = arith.constant 0 : index
    %0 = vector.load %arg1[%c0, %c0_0] : memref<1024x32xf32, #tpu.memory_space<vmem>>, vector<1024x32xf32>
    %1 = arith.truncf %0 : vector<1024x32xf32> to vector<1024x32xbf16>
    %c0_1 = arith.constant 0 : index
    %c0_2 = arith.constant 0 : index
    %2 = vector.load %arg2[%c0_1, %c0_2] : memref<32x128xbf16, #tpu.memory_space<vmem>>, vector<32x128xbf16>
    %cst = arith.constant dense<0.000000e+00> : vector<1024x128xf32>
    %3 = tpu.matmul %1, %2, %cst {dimension_numbers = #tpu.dot_dimension_numbers<[1], [0], [0], [1], [0, 0, 1, 1], [], []>} : vector<1024x32xbf16>, vector<32x128xbf16>, vector<1024x128xf32> -> vector<1024x128xf32>
    %c0_3 = arith.constant 0 : index
    %c0_4 = arith.constant 0 : index
    %4 = vector.load %arg3[%c0_3, %c0_4] : memref<1x128xf32, #tpu.memory_space<vmem>>, vector<1x128xf32>
    %5 = vector.broadcast %4 : vector<1x128xf32> to vector<1024x128xf32>
    %6 = arith.addf %3, %5 : vector<1024x128xf32>
    %cst_5 = arith.constant 0.000000e+00 : f32
    %7 = vector.broadcast %cst_5 : f32 to vector<1024x128xf32>
    %8 = arith.maximumf %6, %7 : vector<1024x128xf32>
    %9 = arith.truncf %8 : vector<1024x128xf32> to vector<1024x128xbf16>
    %c0_6 = arith.constant 0 : index
    %c0_7 = arith.constant 0 : index
    %10 = vector.load %arg4[%c0_6, %c0_7] : memref<128x128xbf16, #tpu.memory_space<vmem>>, vector<128x128xbf16>
    %cst_8 = arith.constant dense<0.000000e+00> : vector<1024x128xf32>
    %11 = tpu.matmul %9, %10, %cst_8 {dimension_numbers = #tpu.dot_dimension_numbers<[1], [0], [0], [1], [0, 0, 1, 1], [], []>} : vector<1024x128xbf16>, vector<128x128xbf16>, vector<1024x128xf32> -> vector<1024x128xf32>
    %c0_9 = arith.constant 0 : index
    %c0_10 = arith.constant 0 : index
    %12 = vector.load %arg5[%c0_9, %c0_10] : memref<1x128xf32, #tpu.memory_space<vmem>>, vector<1x128xf32>
    %13 = vector.broadcast %12 : vector<1x128xf32> to vector<1024x128xf32>
    %14 = arith.addf %11, %13 : vector<1024x128xf32>
    %cst_11 = arith.constant 0.000000e+00 : f32
    %15 = vector.broadcast %cst_11 : f32 to vector<1024x128xf32>
    %16 = arith.maximumf %14, %15 : vector<1024x128xf32>
    %17 = arith.truncf %16 : vector<1024x128xf32> to vector<1024x128xbf16>
    %c0_12 = arith.constant 0 : index
    %c0_13 = arith.constant 0 : index
    %18 = vector.load %arg6[%c0_12, %c0_13] : memref<8x128xbf16, #tpu.memory_space<vmem>>, vector<8x128xbf16>
    %cst_14 = arith.constant dense<0.000000e+00> : vector<8x1024xf32>
    %19 = tpu.matmul %18, %17, %cst_14 {dimension_numbers = #tpu.dot_dimension_numbers<[1], [1], [0], [0], [0, 0, 1, 0], [], []>} : vector<8x128xbf16>, vector<1024x128xbf16>, vector<8x1024xf32> -> vector<8x1024xf32>
    %c0_15 = arith.constant 0 : index
    %c0_16 = arith.constant 0 : index
    %20 = vector.load %arg7[%c0_15, %c0_16] : memref<8x1xf32, #tpu.memory_space<vmem>>, vector<8x1xf32>
    %21 = vector.broadcast %20 : vector<8x1xf32> to vector<8x1024xf32>
    %22 = arith.addf %19, %21 : vector<8x1024xf32>
    %cst_17 = arith.constant dense<0xFF800000> : vector<1024xf32>
    %23 = vector.multi_reduction <maximumf>, %22, %cst_17 [0] : vector<8x1024xf32> to vector<1024xf32>
    %24 = vector.shape_cast %23 : vector<1024xf32> to vector<1x1024xf32>
    %25 = vector.broadcast %24 : vector<1x1024xf32> to vector<8x1024xf32>
    %26 = arith.cmpf oeq, %22, %25 : vector<8x1024xf32>
    %27 = tpu.iota {dimensions = array<i32: 0>} : vector<8x1024xi32>
    %c8_i32 = arith.constant 8 : i32
    %28 = vector.broadcast %c8_i32 : i32 to vector<8x1024xi32>
    %29 = arith.select %26, %27, %28 : vector<8x1024xi1>, vector<8x1024xi32>
    %cst_18 = arith.constant dense<2147483647> : vector<1024xi32>
    %30 = vector.multi_reduction <minsi>, %29, %cst_18 [0] : vector<8x1024xi32> to vector<1024xi32>
    %31 = vector.shape_cast %30 : vector<1024xi32> to vector<1x1024xi32>
    %c0_19 = arith.constant 0 : index
    %c0_20 = arith.constant 0 : index
    %32 = vector.load %arg8[%c0_19, %c0_20] : memref<8x1xi32, #tpu.memory_space<vmem>>, vector<8x1xi32>
    %33 = vector.shape_cast %32 : vector<8x1xi32> to vector<8x1xi32>
    %34 = vector.broadcast %33 : vector<8x1xi32> to vector<8x1024xi32>
    %35 = vector.broadcast %31 : vector<1x1024xi32> to vector<8x1024xi32>
    %36 = arith.cmpi eq, %27, %35 : vector<8x1024xi32>
    %c0_i32 = arith.constant 0 : i32
    %37 = vector.broadcast %c0_i32 : i32 to vector<8x1024xi32>
    %38 = arith.select %36, %34, %37 : vector<8x1024xi1>, vector<8x1024xi32>
    %cst_21 = arith.constant dense<0> : vector<1024xi32>
    %39 = vector.multi_reduction <add>, %38, %cst_21 [0] : vector<8x1024xi32> to vector<1024xi32>
    %40 = vector.shape_cast %39 : vector<1024xi32> to vector<1x1024xi32>
    %c0_22 = arith.constant 0 : index
    %c0_23 = arith.constant 0 : index
    %41 = vector.load %arg9[%c0_22, %c0_23] : memref<1x1024xi32, #tpu.memory_space<vmem>>, vector<1x1024xi32>
    tpu.vector_store %arg9[%c0_22, %c0_23], %40 {strides = array<i32>} : memref<1x1024xi32, #tpu.memory_space<vmem>>, vector<1x1024xi32>,
    return
  }
  func.func @transform_0(%arg0: i32) -> (i32, i32) {
    %c0_i32 = arith.constant 0 : i32
    %c0_i32_0 = arith.constant 0 : i32
    return %arg0, %c0_i32 : i32, i32
  }
  func.func @transform_1(%arg0: i32) -> (i32, i32) {
    %c0_i32 = arith.constant 0 : i32
    %c0_i32_0 = arith.constant 0 : i32
    %c0_i32_1 = arith.constant 0 : i32
    return %c0_i32, %c0_i32_0 : i32, i32
  }
  func.func @transform_2(%arg0: i32) -> (i32, i32) {
    %c0_i32 = arith.constant 0 : i32
    %c0_i32_0 = arith.constant 0 : i32
    %c0_i32_1 = arith.constant 0 : i32
    return %c0_i32, %c0_i32_0 : i32, i32
  }
  func.func @transform_3(%arg0: i32) -> (i32, i32) {
    %c0_i32 = arith.constant 0 : i32
    %c0_i32_0 = arith.constant 0 : i32
    %c0_i32_1 = arith.constant 0 : i32
    return %c0_i32, %c0_i32_0 : i32, i32
  }
  func.func @transform_4(%arg0: i32) -> (i32, i32) {
    %c0_i32 = arith.constant 0 : i32
    %c0_i32_0 = arith.constant 0 : i32
    %c0_i32_1 = arith.constant 0 : i32
    return %c0_i32, %c0_i32_0 : i32, i32
  }
  func.func @transform_5(%arg0: i32) -> (i32, i32) {
    %c0_i32 = arith.constant 0 : i32
    %c0_i32_0 = arith.constant 0 : i32
    %c0_i32_1 = arith.constant 0 : i32
    return %c0_i32, %c0_i32_0 : i32, i32
  }
  func.func @transform_6(%arg0: i32) -> (i32, i32) {
    %c0_i32 = arith.constant 0 : i32
    %c0_i32_0 = arith.constant 0 : i32
    %c0_i32_1 = arith.constant 0 : i32
    return %c0_i32, %c0_i32_0 : i32, i32
  }
  func.func @transform_7(%arg0: i32) -> (i32, i32) {
    %c0_i32 = arith.constant 0 : i32
    %c0_i32_0 = arith.constant 0 : i32
    %c0_i32_1 = arith.constant 0 : i32
    return %c0_i32, %c0_i32_0 : i32, i32
  }
  func.func @transform_8(%arg0: i32) -> (i32, i32) {
    %c0_i32 = arith.constant 0 : i32
    %c0_i32_0 = arith.constant 0 : i32
    return %c0_i32, %arg0 : i32, i32
  }
}

</mosaic_0001>

<llo_original>
// kernel: mlp_classifier_predict_padded.1
$region0: #{mlp_classifier_predict_padded.1}
  #allocation0 [shape = 'u32[]', space=smem, size = 0x4, offset = 0x4, fixed_abs, tag = 'smem constant byte address 0x4 - core index']
  #allocation1 [shape = 'u32[144,128]{1,0:T(1,128)}', space=vmem, size = 0x12000, scoped, tag = 'internal scratch']
  %s0 = inlined_call_operand.vmem [shape: f32[2048,32], index: 0, kind: input, shape index: {}]
  %s1 = inlined_call_operand.vmem [shape: bf16[32,128], index: 1, kind: input, shape index: {}]
  %s2 = inlined_call_operand.vmem [shape: f32[1,128], index: 2, kind: input, shape index: {}]
  %s3 = inlined_call_operand.vmem [shape: bf16[128,128], index: 3, kind: input, shape index: {}]
  %s4 = inlined_call_operand.vmem [shape: f32[1,128], index: 4, kind: input, shape index: {}]
  %s5 = inlined_call_operand.vmem [shape: bf16[8,128], index: 5, kind: input, shape index: {}]
  %s6 = inlined_call_operand.vmem [shape: f32[8,1], index: 6, kind: input, shape index: {}]
  %s7 = inlined_call_operand.vmem [shape: s32[8,1], index: 7, kind: input, shape index: {}]
  %s8 = inlined_call_operand.hbm [shape: s32[1,2048], index: 8, kind: output, shape index: {}]
  %s9 = sld [smem:[#allocation0]]
  $region65: #{mlp_classifier_predict_padded.1} parent=0
    _
  %s11 = ssub.s32 1, %s9
  %s12 = scalar_select 0, %s11, %s9
  $region1: #{mlp_classifier_predict_padded.1} parent=0
    #allocation2 [shape = 'u8[8192]{0}', space=vmem, size = 0x2000, scoped, tag = 'output window, operand 0']
    #allocation3 [shape = 's32[2]{0}', space=sflag, size = 0x8, scoped, tag = 'scoped memory for mlp_classifier_predict_padded.1']
    %13 = vsyncpa [#allocation3], 0
    %s14 = scalar_lea.sflag [#allocation3], 1
    %15 = vsyncpa %s14, 0
    loop: start=0, step=1, limit=4
    $region2: #{mlp_classifier_predict_padded.1} parent=1 // loop_pre_header
      _
    $region3: #{mlp_classifier_predict_padded.1} parent=1 // loop_header
      %s17 = sphi 0, %s21
      %p18 = scmp.ge.s32.totalorder %s17, 4
      %s27 = sphi 0, %s29
      %s30 = sphi 0, %s27
      %s31 = sphi 0, %s30
      %s47 = sphi 0, %s31
      %s51 = sphi 0, %s51
      %s53 = sphi 0, %s51
      %s54 = sphi 0, %s53
      %s68 = sphi 0, %s54
      %s72 = sphi 0, %s72
      %s74 = sphi 0, %s72
      %s75 = sphi 0, %s74
      %s89 = sphi 0, %s75
      %s93 = sphi 0, %s93
      %s95 = sphi 0, %s93
      %s96 = sphi 0, %s95
      %s110 = sphi 0, %s96
      %s114 = sphi 0, %s114
      %s116 = sphi 0, %s114
      %s117 = sphi 0, %s116
      %s131 = sphi 0, %s117
      %s135 = sphi 0, %s135
      %s137 = sphi 0, %s135
      %s138 = sphi 0, %s137
      %s152 = sphi 0, %s138
      %s156 = sphi 0, %s156
      %s158 = sphi 0, %s156
      %s159 = sphi 0, %s158
      %s173 = sphi 0, %s159
      %s177 = sphi 0, %s177
      %s179 = sphi 0, %s177
      %s180 = sphi 0, %s179
      %s194 = sphi 0, %s180
      %s200 = sphi 0, %s202
      %s203 = sphi 0, %s200
      %s204 = sphi 0, %s203
      %s220 = sphi 0, %s204
    $region4: #{mlp_classifier_predict_padded.1} parent=1 // loop_header_branch
      %20 = sbr.rel (%p18) target = $region8
    $region5: #{mlp_classifier_predict_padded.1} parent=1 // loop_body
      %s22 = ssub.s32 %s17, 1
      %s23 = ssub.s32 %s17, 2
      %s24 = sadd.s32 %s17, 1
      %s25 = ssub.s32 %s17, %s24
      %p26 = scmp.eq.s32.totalorder %s25, 0
      %s28 = sadd.s32 %s27, 1
      %s29 = scalar_select %p26, %s27, %s28
      %p32 = pneg %p26
      %p33 = scmp.eq.s32.totalorder %s17, 1
      %p34 = por %p32, %p33
      %p35 = scmp.ne.s32.totalorder %s27, %s30
      %p36 = scmp.eq.s32.totalorder %s17, 0
      %p37 = por %p35, %p36
      %p38 = scmp.ne.s32.totalorder %s27, %s30
      %p39 = scmp.eq.s32.totalorder %s22, 1
      %p40 = por %p38, %p39
      %p41 = scmp.ne.s32.totalorder %s30, %s31
      %p42 = scmp.eq.s32.totalorder %s22, 0
      %p43 = por %p41, %p42
      %p44 = scmp.ne.s32.totalorder %s30, %s31
      %p45 = scmp.eq.s32.totalorder %s23, 1
      %p46 = por %p44, %p45
      %p48 = scmp.ne.s32.totalorder %s31, %s47
      %p49 = scmp.eq.s32.totalorder %s23, 0
      %p50 = por %p48, %p49
      %s52 = sadd.s32 %s51, 1
      %p55 = scmp.eq.s32.totalorder %s17, 1
      %p56 = scmp.ne.s32.totalorder %s51, %s53
      %p57 = scmp.eq.s32.totalorder %s17, 0
      %p58 = por %p56, %p57
      %p59 = scmp.ne.s32.totalorder %s51, %s53
      %p60 = scmp.eq.s32.totalorder %s22, 1
      %p61 = por %p59, %p60
      %p62 = scmp.ne.s32.totalorder %s53, %s54
      %p63 = scmp.eq.s32.totalorder %s22, 0
      %p64 = por %p62, %p63
      %p65 = scmp.ne.s32.totalorder %s53, %s54
      %p66 = scmp.eq.s32.totalorder %s23, 1
      %p67 = por %p65, %p66
      %p69 = scmp.ne.s32.totalorder %s54, %s68
      %p70 = scmp.eq.s32.totalorder %s23, 0
      %p71 = por %p69, %p70
      %s73 = sadd.s32 %s72, 1
      %p76 = scmp.eq.s32.totalorder %s17, 1
      %p77 = scmp.ne.s32.totalorder %s72, %s74
      %p78 = scmp.eq.s32.totalorder %s17, 0
      %p79 = por %p77, %p78
      %p80 = scmp.ne.s32.totalorder %s72, %s74
      %p81 = scmp.eq.s32.totalorder %s22, 1
      %p82 = por %p80, %p81
      %p83 = scmp.ne.s32.totalorder %s74, %s75
      %p84 = scmp.eq.s32.totalorder %s22, 0
      %p85 = por %p83, %p84
      %p86 = scmp.ne.s32.totalorder %s74, %s75
      %p87 = scmp.eq.s32.totalorder %s23, 1
      %p88 = por %p86, %p87
      %p90 = scmp.ne.s32.totalorder %s75, %s89
      %p91 = scmp.eq.s32.totalorder %s23, 0
      %p92 = por %p90, %p91
      %s94 = sadd.s32 %s93, 1
      %p97 = scmp.eq.s32.totalorder %s17, 1
      %p98 = scmp.ne.s32.totalorder %s93, %s95
      %p99 = scmp.eq.s32.totalorder %s17, 0
      %p100 = por %p98, %p99
      %p101 = scmp.ne.s32.totalorder %s93, %s95
      %p102 = scmp.eq.s32.totalorder %s22, 1
      %p103 = por %p101, %p102
      %p104 = scmp.ne.s32.totalorder %s95, %s96
      %p105 = scmp.eq.s32.totalorder %s22, 0
      %p106 = por %p104, %p105
      %p107 = scmp.ne.s32.totalorder %s95, %s96
      %p108 = scmp.eq.s32.totalorder %s23, 1
      %p109 = por %p107, %p108
      %p111 = scmp.ne.s32.totalorder %s96, %s110
      %p112 = scmp.eq.s32.totalorder %s23, 0
      %p113 = por %p111, %p112
      %s115 = sadd.s32 %s114, 1
      %p118 = scmp.eq.s32.totalorder %s17, 1
      %p119 = scmp.ne.s32.totalorder %s114, %s116
      %p120 = scmp.eq.s32.totalorder %s17, 0
      %p121 = por %p119, %p120
      %p122 = scmp.ne.s32.totalorder %s114, %s116
      %p123 = scmp.eq.s32.totalorder %s22, 1
      %p124 = por %p122, %p123
      %p125 = scmp.ne.s32.totalorder %s116, %s117
      %p126 = scmp.eq.s32.totalorder %s22, 0
      %p127 = por %p125, %p126
      %p128 = scmp.ne.s32.totalorder %s116, %s117
      %p129 = scmp.eq.s32.totalorder %s23, 1
      %p130 = por %p128, %p129
      %p132 = scmp.ne.s32.totalorder %s117, %s131
      %p133 = scmp.eq.s32.totalorder %s23, 0
      %p134 = por %p132, %p133
      %s136 = sadd.s32 %s135, 1
      %p139 = scmp.eq.s32.totalorder %s17, 1
      %p140 = scmp.ne.s32.totalorder %s135, %s137
      %p141 = scmp.eq.s32.totalorder %s17, 0
      %p142 = por %p140, %p141
      %p143 = scmp.ne.s32.totalorder %s135, %s137
      %p144 = scmp.eq.s32.totalorder %s22, 1
      %p145 = por %p143, %p144
      %p146 = scmp.ne.s32.totalorder %s137, %s138
      %p147 = scmp.eq.s32.totalorder %s22, 0
      %p148 = por %p146, %p147
      %p149 = scmp.ne.s32.totalorder %s137, %s138
      %p150 = scmp.eq.s32.totalorder %s23, 1
      %p151 = por %p149, %p150
      %p153 = scmp.ne.s32.totalorder %s138, %s152
      %p154 = scmp.eq.s32.totalorder %s23, 0
      %p155 = por %p153, %p154
      %s157 = sadd.s32 %s156, 1
      %p160 = scmp.eq.s32.totalorder %s17, 1
      %p161 = scmp.ne.s32.totalorder %s156, %s158
      %p162 = scmp.eq.s32.totalorder %s17, 0
      %p163 = por %p161, %p162
      %p164 = scmp.ne.s32.totalorder %s156, %s158
      %p165 = scmp.eq.s32.totalorder %s22, 1
      %p166 = por %p164, %p165
      %p167 = scmp.ne.s32.totalorder %s158, %s159
      %p168 = scmp.eq.s32.totalorder %s22, 0
      %p169 = por %p167, %p168
      %p170 = scmp.ne.s32.totalorder %s158, %s159
      %p171 = scmp.eq.s32.totalorder %s23, 1
      %p172 = por %p170, %p171
      %p174 = scmp.ne.s32.totalorder %s159, %s173
      %p175 = scmp.eq.s32.totalorder %s23, 0
      %p176 = por %p174, %p175
      %s178 = sadd.s32 %s177, 1
      %p181 = scmp.eq.s32.totalorder %s17, 1
      %p182 = scmp.ne.s32.totalorder %s177, %s179
      %p183 = scmp.eq.s32.totalorder %s17, 0
      %p184 = por %p182, %p183
      %p185 = scmp.ne.s32.totalorder %s177, %s179
      %p186 = scmp.eq.s32.totalorder %s22, 1
      %p187 = por %p185, %p186
      %p188 = scmp.ne.s32.totalorder %s179, %s180
      %p189 = scmp.eq.s32.totalorder %s22, 0
      %p190 = por %p188, %p189
      %p191 = scmp.ne.s32.totalorder %s179, %s180
      %p192 = scmp.eq.s32.totalorder %s23, 1
      %p193 = por %p191, %p192
      %p195 = scmp.ne.s32.totalorder %s180, %s194
      %p196 = scmp.eq.s32.totalorder %s23, 0
      %p197 = por %p195, %p196
      %s198 = ssub.s32 %s17, %s24
      %p199 = scmp.eq.s32.totalorder %s198, 0
      %s201 = sadd.s32 %s200, 1
      %s202 = scalar_select %p199, %s200, %s201
      %p205 = pneg %p199
      %p206 = scmp.eq.s32.totalorder %s17, 1
      %p207 = por %p205, %p206
      %p208 = scmp.ne.s32.totalorder %s200, %s203
      %p209 = scmp.eq.s32.totalorder %s17, 0
      %p210 = por %p208, %p209
      %p211 = scmp.ne.s32.totalorder %s200, %s203
      %p212 = scmp.eq.s32.totalorder %s22, 1
      %p213 = por %p211, %p212
      %p214 = scmp.ne.s32.totalorder %s203, %s204
      %p215 = scmp.eq.s32.totalorder %s22, 0
      %p216 = por %p214, %p215
      %p217 = scmp.ne.s32.totalorder %s203, %s204
      %p218 = scmp.eq.s32.totalorder %s23, 1
      %p219 = por %p217, %p218
      %p221 = scmp.ne.s32.totalorder %s204, %s220
      %p222 = scmp.eq.s32.totalorder %s23, 0
      %p223 = por %p221, %p222
      %p224 = scmp.le.s32.totalorder 1, %s17
      %p225 = scmp.lt.s32.totalorder %s17, 3
      %p226 = pnand %p224, %p225
      %p227 = pneg %p226
      // Predicated region
      $region9: #{mlp_classifier_predict_padded.1} parent=5 // pred_check
        _
      $region10: #{mlp_classifier_predict_padded.1} parent=5 // pred_check_branch
        %229 = sbr.rel (%p226) target = $region12
      $region11: #{mlp_classifier_predict_padded.1} parent=5 // pred_region
        %s230 = ssub.s32 %s17, 1
        // Predicated region
        $region13: #{mlp_classifier_predict_padded.1} parent=11 // pred_check
          %p231 = pneg %p64
        $region14: #{mlp_classifier_predict_padded.1} parent=11 // pred_check_branch
          %233 = sbr.rel (%p231) target = $region16
        $region15: #{mlp_classifier_predict_padded.1} parent=11 // pred_region
          _
        $region16: #{mlp_classifier_predict_padded.1} parent=11 // pred_fallthru
          _
        // Predicated region
        $region17: #{mlp_classifier_predict_padded.1} parent=11 // pred_check
          %p234 = pneg %p85
        $region18: #{mlp_classifier_predict_padded.1} parent=11 // pred_check_branch
          %236 = sbr.rel (%p234) target = $region20
        $region19: #{mlp_classifier_predict_padded.1} parent=11 // pred_region
          _
        $region20: #{mlp_classifier_predict_padded.1} parent=11 // pred_fallthru
          _
        // Predicated region
        $region21: #{mlp_classifier_predict_padded.1} parent=11 // pred_check
          %p237 = pneg %p106
        $region22: #{mlp_classifier_predict_padded.1} parent=11 // pred_check_branch
          %239 = sbr.rel (%p237) target = $region24
        $region23: #{mlp_classifier_predict_padded.1} parent=11 // pred_region
          _
        $region24: #{mlp_classifier_predict_padded.1} parent=11 // pred_fallthru
          _
        // Predicated region
        $region25: #{mlp_classifier_predict_padded.1} parent=11 // pred_check
          %p240 = pneg %p127
        $region26: #{mlp_classifier_predict_padded.1} parent=11 // pred_check_branch
          %242 = sbr.rel (%p240) target = $region28
        $region27: #{mlp_classifier_predict_padded.1} parent=11 // pred_region
          _
        $region28: #{mlp_classifier_predict_padded.1} parent=11 // pred_fallthru
          _
        // Predicated region
        $region29: #{mlp_classifier_predict_padded.1} parent=11 // pred_check
          %p243 = pneg %p148
        $region30: #{mlp_classifier_predict_padded.1} parent=11 // pred_check_branch
          %245 = sbr.rel (%p243) target = $region32
        $region31: #{mlp_classifier_predict_padded.1} parent=11 // pred_region
          _
        $region32: #{mlp_classifier_predict_padded.1} parent=11 // pred_fallthru
          _
        // Predicated region
        $region33: #{mlp_classifier_predict_padded.1} parent=11 // pred_check
          %p246 = pneg %p169
        $region34: #{mlp_classifier_predict_padded.1} parent=11 // pred_check_branch
          %248 = sbr.rel (%p246) target = $region36
        $region35: #{mlp_classifier_predict_padded.1} parent=11 // pred_region
          _
        $region36: #{mlp_classifier_predict_padded.1} parent=11 // pred_fallthru
          _
        // Predicated region
        $region37: #{mlp_classifier_predict_padded.1} parent=11 // pred_check
          %p249 = pneg %p190
        $region38: #{mlp_classifier_predict_padded.1} parent=11 // pred_check_branch
          %251 = sbr.rel (%p249) target = $region40
        $region39: #{mlp_classifier_predict_padded.1} parent=11 // pred_region
          _
        $region40: #{mlp_classifier_predict_padded.1} parent=11 // pred_fallthru
          _
      $region12: #{mlp_classifier_predict_padded.1} parent=5 // pred_fallthru
        _
      %p252 = scmp.lt.s32.totalorder %s17, 2
      // Predicated region
      $region41: #{mlp_classifier_predict_padded.1} parent=5 // pred_check
        %p253 = pneg %p252
      $region42: #{mlp_classifier_predict_padded.1} parent=5 // pred_check_branch
        %255 = sbr.rel (%p253) target = $region44
      $region43: #{mlp_classifier_predict_padded.1} parent=5 // pred_region
        // Predicated region
        $region45: #{mlp_classifier_predict_padded.1} parent=43 // pred_check
          %p256 = pneg %p37
        $region46: #{mlp_classifier_predict_padded.1} parent=43 // pred_check_branch
          %258 = sbr.rel (%p256) target = $region48
        $region47: #{mlp_classifier_predict_padded.1} parent=43 // pred_region
          %s259 = smul.u32 128, %s17
          %p260 = scmp.lt.s32.totalorder %s259, 255
          %s261 = scalar_select %p260, %s259, 255
          %s262 = smul.addr %s261, 8
          %s263 = scalar_lea.vmem %s0, %s262
          %s264 = smul.u32 128, %s17
        $region48: #{mlp_classifier_predict_padded.1} parent=43 // pred_fallthru
          _
      $region44: #{mlp_classifier_predict_padded.1} parent=5 // pred_fallthru
        _
      %p265 = scmp.le.s32.totalorder 1, %s17
      %p266 = scmp.lt.s32.totalorder %s17, 3
      %p267 = pnand %p265, %p266
      %p268 = pneg %p267
      // Predicated region
      $region49: #{mlp_classifier_predict_padded.1} parent=5 // pred_check
        _
      $region50: #{mlp_classifier_predict_padded.1} parent=5 // pred_check_branch
        %270 = sbr.rel (%p267) target = $region52
      $region51: #{mlp_classifier_predict_padded.1} parent=5 // pred_region
        %s271 = ssub.s32 %s17, 1
        %s272 = smul.u32 128, %s22
        %p273 = scmp.lt.s32.totalorder %s272, 255
        %s274 = scalar_select %p273, %s272, 255
        %s275 = smul.addr %s274, 8
        %s276 = scalar_lea.vmem %s0, %s275
        %p277 = pneg %p43
        %p278 = pneg %p40
        %p279 = pneg %p64
        %p280 = pneg %p61
        %p281 = pneg %p85
        %p282 = pneg %p82
        %p283 = pneg %p106
        %p284 = pneg %p103
        %p285 = pneg %p127
        %p286 = pneg %p124
        %p287 = pneg %p148
        %p288 = pneg %p145
        %p289 = pneg %p169
        %p290 = pneg %p166
        %p291 = pneg %p190
        %p292 = pneg %p187
        %p293 = pneg %p216
        %p294 = pneg %p213
        %s295 = sand.u32 %s203, 1
        %s296 = scalar_lea.sflag [#allocation3], %s295
        %s297 = sand.u32 %s203, 1
        %s298 = smul.addr %s297, 8
        %s299 = scalar_lea.vmem [#allocation2], %s298
        %s300 = smul.u32 128, %s22
        %p301 = scmp.lt.s32.totalorder %s300, 255
        %s302 = scalar_select %p301, %s300, 255
        %s303 = smul.addr %s302, 8
        %s304 = scalar_lea.vmem %s0, %s303
        %s305 = smul.u32 128, %s22
        %s306 = smul.u32 8, %s22
        %v308 = vld [vmem:[%s304] sm:$0xff]
        %v309 = vld [vmem:[%s304 + $0x8] sm:$0xff]
        %v310 = vld [vmem:[%s304 + $0x10] sm:$0xff]
        %v311 = vld [vmem:[%s304 + $0x18] sm:$0xff]
        %v312 = vld [vmem:[%s304 + $0x20] sm:$0xff]
        %v313 = vld [vmem:[%s304 + $0x28] sm:$0xff]
        %v314 = vld [vmem:[%s304 + $0x30] sm:$0xff]
        %v315 = vld [vmem:[%s304 + $0x38] sm:$0xff]
        %v316 = vld [vmem:[%s304 + $0x40] sm:$0xff]
        %v317 = vld [vmem:[%s304 + $0x48] sm:$0xff]
        %v318 = vld [vmem:[%s304 + $0x50] sm:$0xff]
        %v319 = vld [vmem:[%s304 + $0x58] sm:$0xff]
        %v320 = vld [vmem:[%s304 + $0x60] sm:$0xff]
        %v321 = vld [vmem:[%s304 + $0x68] sm:$0xff]
        %v322 = vld [vmem:[%s304 + $0x70] sm:$0xff]
        %v323 = vld [vmem:[%s304 + $0x78] sm:$0xff]
        %v324 = vld [vmem:[%s304 + $0x80] sm:$0xff]
        %v325 = vld [vmem:[%s304 + $0x88] sm:$0xff]
        %v326 = vld [vmem:[%s304 + $0x90] sm:$0xff]
        %v327 = vld [vmem:[%s304 + $0x98] sm:$0xff]
        %v328 = vld [vmem:[%s304 + $0xa0] sm:$0xff]
        %v329 = vld [vmem:[%s304 + $0xa8] sm:$0xff]
        %v330 = vld [vmem:[%s304 + $0xb0] sm:$0xff]
        %v331 = vld [vmem:[%s304 + $0xb8] sm:$0xff]
        %v332 = vld [vmem:[%s304 + $0xc0] sm:$0xff]
        %v333 = vld [vmem:[%s304 + $0xc8] sm:$0xff]
        %v334 = vld [vmem:[%s304 + $0xd0] sm:$0xff]
        %v335 = vld [vmem:[%s304 + $0xd8] sm:$0xff]
        %v336 = vld [vmem:[%s304 + $0xe0] sm:$0xff]
        %v337 = vld [vmem:[%s304 + $0xe8] sm:$0xff]
        %v338 = vld [vmem:[%s304 + $0xf0] sm:$0xff]
        %v339 = vld [vmem:[%s304 + $0xf8] sm:$0xff]
        %v340 = vld [vmem:[%s304 + $0x100] sm:$0xff]
        %v341 = vld [vmem:[%s304 + $0x108] sm:$0xff]
        %v342 = vld [vmem:[%s304 + $0x110] sm:$0xff]
        %v343 = vld [vmem:[%s304 + $0x118] sm:$0xff]
        %v344 = vld [vmem:[%s304 + $0x120] sm:$0xff]
        %v345 = vld [vmem:[%s304 + $0x128] sm:$0xff]
        %v346 = vld [vmem:[%s304 + $0x130] sm:$0xff]
        %v347 = vld [vmem:[%s304 + $0x138] sm:$0xff]
        %v348 = vld [vmem:[%s304 + $0x140] sm:$0xff]
        %v349 = vld [vmem:[%s304 + $0x148] sm:$0xff]
        %v350 = vld [vmem:[%s304 + $0x150] sm:$0xff]
        %v351 = vld [vmem:[%s304 + $0x158] sm:$0xff]
        %v352 = vld [vmem:[%s304 + $0x160] sm:$0xff]
        %v353 = vld [vmem:[%s304 + $0x168] sm:$0xff]
        %v354 = vld [vmem:[%s304 + $0x170] sm:$0xff]
        %v355 = vld [vmem:[%s304 + $0x178] sm:$0xff]
        %v356 = vld [vmem:[%s304 + $0x180] sm:$0xff]
        %v357 = vld [vmem:[%s304 + $0x188] sm:$0xff]
        %v358 = vld [vmem:[%s304 + $0x190] sm:$0xff]
        %v359 = vld [vmem:[%s304 + $0x198] sm:$0xff]
        %v360 = vld [vmem:[%s304 + $0x1a0] sm:$0xff]
        %v361 = vld [vmem:[%s304 + $0x1a8] sm:$0xff]
        %v362 = vld [vmem:[%s304 + $0x1b0] sm:$0xff]
        %v363 = vld [vmem:[%s304 + $0x1b8] sm:$0xff]
        %v364 = vld [vmem:[%s304 + $0x1c0] sm:$0xff]
        %v365 = vld [vmem:[%s304 + $0x1c8] sm:$0xff]
        %v366 = vld [vmem:[%s304 + $0x1d0] sm:$0xff]
        %v367 = vld [vmem:[%s304 + $0x1d8] sm:$0xff]
        %v368 = vld [vmem:[%s304 + $0x1e0] sm:$0xff]
        %v369 = vld [vmem:[%s304 + $0x1e8] sm:$0xff]
        %v370 = vld [vmem:[%s304 + $0x1f0] sm:$0xff]
        %v371 = vld [vmem:[%s304 + $0x1f8] sm:$0xff]
        %v372 = vld [vmem:[%s304 + $0x200] sm:$0xff]
        %v373 = vld [vmem:[%s304 + $0x208] sm:$0xff]
        %v374 = vld [vmem:[%s304 + $0x210] sm:$0xff]
        %v375 = vld [vmem:[%s304 + $0x218] sm:$0xff]
        %v376 = vld [vmem:[%s304 + $0x220] sm:$0xff]
        %v377 = vld [vmem:[%s304 + $0x228] sm:$0xff]
        %v378 = vld [vmem:[%s304 + $0x230] sm:$0xff]
        %v379 = vld [vmem:[%s304 + $0x238] sm:$0xff]
        %v380 = vld [vmem:[%s304 + $0x240] sm:$0xff]
        %v381 = vld [vmem:[%s304 + $0x248] sm:$0xff]
        %v382 = vld [vmem:[%s304 + $0x250] sm:$0xff]
        %v383 = vld [vmem:[%s304 + $0x258] sm:$0xff]
        %v384 = vld [vmem:[%s304 + $0x260] sm:$0xff]
        %v385 = vld [vmem:[%s304 + $0x268] sm:$0xff]
        %v386 = vld [vmem:[%s304 + $0x270] sm:$0xff]
        %v387 = vld [vmem:[%s304 + $0x278] sm:$0xff]
        %v388 = vld [vmem:[%s304 + $0x280] sm:$0xff]
        %v389 = vld [vmem:[%s304 + $0x288] sm:$0xff]
        %v390 = vld [vmem:[%s304 + $0x290] sm:$0xff]
        %v391 = vld [vmem:[%s304 + $0x298] sm:$0xff]
        %v392 = vld [vmem:[%s304 + $0x2a0] sm:$0xff]
        %v393 = vld [vmem:[%s304 + $0x2a8] sm:$0xff]
        %v394 = vld [vmem:[%s304 + $0x2b0] sm:$0xff]
        %v395 = vld [vmem:[%s304 + $0x2b8] sm:$0xff]
        %v396 = vld [vmem:[%s304 + $0x2c0] sm:$0xff]
        %v397 = vld [vmem:[%s304 + $0x2c8] sm:$0xff]
        %v398 = vld [vmem:[%s304 + $0x2d0] sm:$0xff]
        %v399 = vld [vmem:[%s304 + $0x2d8] sm:$0xff]
        %v400 = vld [vmem:[%s304 + $0x2e0] sm:$0xff]
        %v401 = vld [vmem:[%s304 + $0x2e8] sm:$0xff]
        %v402 = vld [vmem:[%s304 + $0x2f0] sm:$0xff]
        %v403 = vld [vmem:[%s304 + $0x2f8] sm:$0xff]
        %v404 = vld [vmem:[%s304 + $0x300] sm:$0xff]
        %v405 = vld [vmem:[%s304 + $0x308] sm:$0xff]
        %v406 = vld [vmem:[%s304 + $0x310] sm:$0xff]
        %v407 = vld [vmem:[%s304 + $0x318] sm:$0xff]
        %v408 = vld [vmem:[%s304 + $0x320] sm:$0xff]
        %v409 = vld [vmem:[%s304 + $0x328] sm:$0xff]
        %v410 = vld [vmem:[%s304 + $0x330] sm:$0xff]
        %v411 = vld [vmem:[%s304 + $0x338] sm:$0xff]
        %v412 = vld [vmem:[%s304 + $0x340] sm:$0xff]
        %v413 = vld [vmem:[%s304 + $0x348] sm:$0xff]
        %v414 = vld [vmem:[%s304 + $0x350] sm:$0xff]
        %v415 = vld [vmem:[%s304 + $0x358] sm:$0xff]
        %v416 = vld [vmem:[%s304 + $0x360] sm:$0xff]
        %v417 = vld [vmem:[%s304 + $0x368] sm:$0xff]
        %v418 = vld [vmem:[%s304 + $0x370] sm:$0xff]
        %v419 = vld [vmem:[%s304 + $0x378] sm:$0xff]
        %v420 = vld [vmem:[%s304 + $0x380] sm:$0xff]
        %v421 = vld [vmem:[%s304 + $0x388] sm:$0xff]
        %v422 = vld [vmem:[%s304 + $0x390] sm:$0xff]
        %v423 = vld [vmem:[%s304 + $0x398] sm:$0xff]
        %v424 = vld [vmem:[%s304 + $0x3a0] sm:$0xff]
        %v425 = vld [vmem:[%s304 + $0x3a8] sm:$0xff]
        %v426 = vld [vmem:[%s304 + $0x3b0] sm:$0xff]
        %v427 = vld [vmem:[%s304 + $0x3b8] sm:$0xff]
        %v428 = vld [vmem:[%s304 + $0x3c0] sm:$0xff]
        %v429 = vld [vmem:[%s304 + $0x3c8] sm:$0xff]
        %v430 = vld [vmem:[%s304 + $0x3d0] sm:$0xff]
        %v431 = vld [vmem:[%s304 + $0x3d8] sm:$0xff]
        %v432 = vld [vmem:[%s304 + $0x3e0] sm:$0xff]
        %v433 = vld [vmem:[%s304 + $0x3e8] sm:$0xff]
        %v434 = vld [vmem:[%s304 + $0x3f0] sm:$0xff]
        %v435 = vld [vmem:[%s304 + $0x3f8] sm:$0xff]
        %v436 = vpack.c.bf16 %v309, %v308
        %v437 = vpack.c.bf16 %v311, %v310
        %v438 = vpack.c.bf16 %v313, %v312
        %v439 = vpack.c.bf16 %v315, %v314
        %v440 = vpack.c.bf16 %v317, %v316
        %v441 = vpack.c.bf16 %v319, %v318
        %v442 = vpack.c.bf16 %v321, %v320
        %v443 = vpack.c.bf16 %v323, %v322
        %v444 = vpack.c.bf16 %v325, %v324
        %v445 = vpack.c.bf16 %v327, %v326
        %v446 = vpack.c.bf16 %v329, %v328
        %v447 = vpack.c.bf16 %v331, %v330
        %v448 = vpack.c.bf16 %v333, %v332
        %v449 = vpack.c.bf16 %v335, %v334
        %v450 = vpack.c.bf16 %v337, %v336
        %v451 = vpack.c.bf16 %v339, %v338
        %v452 = vpack.c.bf16 %v341, %v340
        %v453 = vpack.c.bf16 %v343, %v342
        %v454 = vpack.c.bf16 %v345, %v344
        %v455 = vpack.c.bf16 %v347, %v346
        %v456 = vpack.c.bf16 %v349, %v348
        %v457 = vpack.c.bf16 %v351, %v350
        %v458 = vpack.c.bf16 %v353, %v352
        %v459 = vpack.c.bf16 %v355, %v354
        %v460 = vpack.c.bf16 %v357, %v356
        %v461 = vpack.c.bf16 %v359, %v358
        %v462 = vpack.c.bf16 %v361, %v360
        %v463 = vpack.c.bf16 %v363, %v362
        %v464 = vpack.c.bf16 %v365, %v364
        %v465 = vpack.c.bf16 %v367, %v366
        %v466 = vpack.c.bf16 %v369, %v368
        %v467 = vpack.c.bf16 %v371, %v370
        %v468 = vpack.c.bf16 %v373, %v372
        %v469 = vpack.c.bf16 %v375, %v374
        %v470 = vpack.c.bf16 %v377, %v376
        %v471 = vpack.c.bf16 %v379, %v378
        %v472 = vpack.c.bf16 %v381, %v380
        %v473 = vpack.c.bf16 %v383, %v382
        %v474 = vpack.c.bf16 %v385, %v384
        %v475 = vpack.c.bf16 %v387, %v386
        %v476 = vpack.c.bf16 %v389, %v388
        %v477 = vpack.c.bf16 %v391, %v390
        %v478 = vpack.c.bf16 %v393, %v392
        %v479 = vpack.c.bf16 %v395, %v394
        %v480 = vpack.c.bf16 %v397, %v396
        %v481 = vpack.c.bf16 %v399, %v398
        %v482 = vpack.c.bf16 %v401, %v400
        %v483 = vpack.c.bf16 %v403, %v402
        %v484 = vpack.c.bf16 %v405, %v404
        %v485 = vpack.c.bf16 %v407, %v406
        %v486 = vpack.c.bf16 %v409, %v408
        %v487 = vpack.c.bf16 %v411, %v410
        %v488 = vpack.c.bf16 %v413, %v412
        %v489 = vpack.c.bf16 %v415, %v414
        %v490 = vpack.c.bf16 %v417, %v416
        %v491 = vpack.c.bf16 %v419, %v418
        %v492 = vpack.c.bf16 %v421, %v420
        %v493 = vpack.c.bf16 %v423, %v422
        %v494 = vpack.c.bf16 %v425, %v424
        %v495 = vpack.c.bf16 %v427, %v426
        %v496 = vpack.c.bf16 %v429, %v428
        %v497 = vpack.c.bf16 %v431, %v430
        %v498 = vpack.c.bf16 %v433, %v432
        %v499 = vpack.c.bf16 %v435, %v434
        %v500 = vld [vmem:[%s1] sm:$0xf]
        %v501 = vld [vmem:[%s1 + $0x4] sm:$0xf]
        %v502 = vld [vmem:[%s1 + $0x8] sm:$0xf]
        %v503 = vld [vmem:[%s1 + $0xc] sm:$0xf]
        %v504 = vld [vmem:[%s2] sm:$0x1]
        %v506 = vlaneseq
        %v507 = vshrl.u32 %v506, 7
        %v508 = vsub.s32 0, %v507
        %v509 = vrot.slane %v504, %v508
        %v515 = vunpack.c.l.b16 %v500
        %v516 = vunpack.c.l.b16 %v501
        %v517 = vunpack.c.l.b16 %v502
        %v518 = vunpack.c.l.b16 %v503
        %v519 = vpack.c.b16 %v516, %v515
        %v520 = vpack.c.b16 %v518, %v517
        %vm523 = vcmask 261120
        %v525 = vsel %vm523, %v436, 0
        %v528 = vsel %vm523, %v437, 0
        %v531 = vsel %vm523, %v438, 0
        %v534 = vsel %vm523, %v439, 0
        %v537 = vsel %vm523, %v440, 0
        %v540 = vsel %vm523, %v441, 0
        %v543 = vsel %vm523, %v442, 0
        %v546 = vsel %vm523, %v443, 0
        %v549 = vsel %vm523, %v444, 0
        %v552 = vsel %vm523, %v445, 0
        %v555 = vsel %vm523, %v446, 0
        %v558 = vsel %vm523, %v447, 0
        %v561 = vsel %vm523, %v448, 0
        %v564 = vsel %vm523, %v449, 0
        %v567 = vsel %vm523, %v450, 0
        %v570 = vsel %vm523, %v451, 0
        %v573 = vsel %vm523, %v452, 0
        %v576 = vsel %vm523, %v453, 0
        %v579 = vsel %vm523, %v454, 0
        %v582 = vsel %vm523, %v455, 0
        %v585 = vsel %vm523, %v456, 0
        %v588 = vsel %vm523, %v457, 0
        %v591 = vsel %vm523, %v458, 0
        %v594 = vsel %vm523, %v459, 0
        %v597 = vsel %vm523, %v460, 0
        %v600 = vsel %vm523, %v461, 0
        %v603 = vsel %vm523, %v462, 0
        %v606 = vsel %vm523, %v463, 0
        %v609 = vsel %vm523, %v464, 0
        %v612 = vsel %vm523, %v465, 0
        %v615 = vsel %vm523, %v466, 0
        %v618 = vsel %vm523, %v467, 0
        %v621 = vsel %vm523, %v468, 0
        %v624 = vsel %vm523, %v469, 0
        %v627 = vsel %vm523, %v470, 0
        %v630 = vsel %vm523, %v471, 0
        %v633 = vsel %vm523, %v472, 0
        %v636 = vsel %vm523, %v473, 0
        %v639 = vsel %vm523, %v474, 0
        %v642 = vsel %vm523, %v475, 0
        %v645 = vsel %vm523, %v476, 0
        %v648 = vsel %vm523, %v477, 0
        %v651 = vsel %vm523, %v478, 0
        %v654 = vsel %vm523, %v479, 0
        %v657 = vsel %vm523, %v480, 0
        %v660 = vsel %vm523, %v481, 0
        %v663 = vsel %vm523, %v482, 0
        %v666 = vsel %vm523, %v483, 0
        %v669 = vsel %vm523, %v484, 0
        %v672 = vsel %vm523, %v485, 0
        %v675 = vsel %vm523, %v486, 0
        %v678 = vsel %vm523, %v487, 0
        %v681 = vsel %vm523, %v488, 0
        %v684 = vsel %vm523, %v489, 0
        %v687 = vsel %vm523, %v490, 0
        %v690 = vsel %vm523, %v491, 0
        %v693 = vsel %vm523, %v492, 0
        %v696 = vsel %vm523, %v493, 0
        %v699 = vsel %vm523, %v494, 0
        %v702 = vsel %vm523, %v495, 0
        %v705 = vsel %vm523, %v496, 0
        %v708 = vsel %vm523, %v497, 0
        %v711 = vsel %vm523, %v498, 0
        %v714 = vsel %vm523, %v499, 0
        %716 = vmatprep.subr.bf16.mxu0 0
        %717 = vmatpush1.bf16.msra.mxu0 %v519
        %718 = vmatprep.subr.bf16.mxu0 0
        %719 = vmatpush1.bf16.msra.mxu0 %v520
        %720 = vmatprep.subr.bf16.mxu0 0
        %721 = vmatpush1.bf16.msra.mxu0 0
        %722 = vmatprep.subr.bf16.mxu0 0
        %723 = vmatpush1.bf16.msra.mxu0 0
        %724 = vmatprep.subr.bf16.mxu0 0
        %725 = vmatpush1.bf16.msra.mxu0 0
        %726 = vmatprep.subr.bf16.mxu0 0
        %727 = vmatpush1.bf16.msra.mxu0 0
        %728 = vmatprep.subr.bf16.mxu0 0
        %729 = vmatpush1.bf16.msra.mxu0 0
        %730 = vmatprep.subr.bf16.mxu0 0
        %731 = vmatpush1.bf16.msra.mxu0 0
        %732 = vmatprep.subr.bf16.mxu0 0
        %733 = vmatpush1.bf16.msra.mxu0 0
        %734 = vmatprep.subr.bf16.mxu0 0
        %735 = vmatpush1.bf16.msra.mxu0 0
        %736 = vmatprep.subr.bf16.mxu0 0
        %737 = vmatpush1.bf16.msra.mxu0 0
        %738 = vmatprep.subr.bf16.mxu0 0
        %739 = vmatpush1.bf16.msra.mxu0 0
        %740 = vmatprep.subr.bf16.mxu0 0
        %741 = vmatpush1.bf16.msra.mxu0 0
        %742 = vmatprep.subr.bf16.mxu0 0
        %743 = vmatpush1.bf16.msra.mxu0 0
        %744 = vmatprep.subr.bf16.mxu0 0
        %745 = vmatpush1.bf16.msra.mxu0 0
        %746 = vmatprep.subr.bf16.mxu0 0
        %747 = vmatpush1.bf16.msra.mxu0 0
        %748 = vmatprep.mubr.bf16.mxu0 0
        %749 = vmatmul.mubr.bf16.gmra.mrb[0].mxu0 %v525
        %v750 = vpop.f32.mrb[0].mxu0
        %v751 = vadd.f32 %v509, %v750
        %v752 = vpop.f32.mrb[0].mxu0
        %v753 = vpop.f32.mrb[0].mxu0
        %v754 = vadd.f32 %v509, %v753
        %v755 = vpop.f32.mrb[0].mxu0
        %756 = vmatprep.mubr.bf16.mxu0 0
        %757 = vmatmul.mubr.bf16.gmra.mrb[0].mxu0 %v528
        %v758 = vpop.f32.mrb[0].mxu0
        %v759 = vadd.f32 %v509, %v758
        %v760 = vpop.f32.mrb[0].mxu0
        %v761 = vpop.f32.mrb[0].mxu0
        %v762 = vadd.f32 %v509, %v761
        %v763 = vpop.f32.mrb[0].mxu0
        %764 = vmatprep.mubr.bf16.mxu0 0
        %765 = vmatmul.mubr.bf16.gmra.mrb[0].mxu0 %v531
        %v766 = vpop.f32.mrb[0].mxu0
        %v767 = vadd.f32 %v509, %v766
        %v768 = vpop.f32.mrb[0].mxu0
        %v769 = vpop.f32.mrb[0].mxu0
        %v770 = vadd.f32 %v509, %v769
        %v771 = vpop.f32.mrb[0].mxu0
        %772 = vmatprep.mubr.bf16.mxu0 0
        %773 = vmatmul.mubr.bf16.gmra.mrb[0].mxu0 %v534
        %v774 = vpop.f32.mrb[0].mxu0
        %v775 = vadd.f32 %v509, %v774
        %v776 = vpop.f32.mrb[0].mxu0
        %v777 = vpop.f32.mrb[0].mxu0
        %v778 = vadd.f32 %v509, %v777
        %v779 = vpop.f32.mrb[0].mxu0
        %780 = vmatprep.mubr.bf16.mxu0 0
        %781 = vmatmul.mubr.bf16.gmra.mrb[0].mxu0 %v537
        %v782 = vpop.f32.mrb[0].mxu0
        %v783 = vadd.f32 %v509, %v782
        %v784 = vpop.f32.mrb[0].mxu0
        %v785 = vpop.f32.mrb[0].mxu0
        %v786 = vadd.f32 %v509, %v785
        %v787 = vpop.f32.mrb[0].mxu0
        %788 = vmatprep.mubr.bf16.mxu0 0
        %789 = vmatmul.mubr.bf16.gmra.mrb[0].mxu0 %v540
        %v790 = vpop.f32.mrb[0].mxu0
        %v791 = vadd.f32 %v509, %v790
        %v792 = vpop.f32.mrb[0].mxu0
        %v793 = vpop.f32.mrb[0].mxu0
        %v794 = vadd.f32 %v509, %v793
        %v795 = vpop.f32.mrb[0].mxu0
        %796 = vmatprep.mubr.bf16.mxu0 0
        %797 = vmatmul.mubr.bf16.gmra.mrb[0].mxu0 %v543
        %v798 = vpop.f32.mrb[0].mxu0
        %v799 = vadd.f32 %v509, %v798
        %v800 = vpop.f32.mrb[0].mxu0
        %v801 = vpop.f32.mrb[0].mxu0
        %v802 = vadd.f32 %v509, %v801
        %v803 = vpop.f32.mrb[0].mxu0
        %804 = vmatprep.mubr.bf16.mxu0 0
        %805 = vmatmul.mubr.bf16.gmra.mrb[0].mxu0 %v546
        %v806 = vpop.f32.mrb[0].mxu0
        %v807 = vadd.f32 %v509, %v806
        %v808 = vpop.f32.mrb[0].mxu0
        %v809 = vpop.f32.mrb[0].mxu0
        %v810 = vadd.f32 %v509, %v809
        %v811 = vpop.f32.mrb[0].mxu0
        %812 = vmatprep.mubr.bf16.mxu0 0
        %813 = vmatmul.mubr.bf16.gmra.mrb[0].mxu0 %v549
        %v814 = vpop.f32.mrb[0].mxu0
        %v815 = vadd.f32 %v509, %v814
        %v816 = vpop.f32.mrb[0].mxu0
        %v817 = vpop.f32.mrb[0].mxu0
        %v818 = vadd.f32 %v509, %v817
        %v819 = vpop.f32.mrb[0].mxu0
        %820 = vmatprep.mubr.bf16.mxu0 0
        %821 = vmatmul.mubr.bf16.gmra.mrb[0].mxu0 %v552
        %v822 = vpop.f32.mrb[0].mxu0
        %v823 = vadd.f32 %v509, %v822
        %v824 = vpop.f32.mrb[0].mxu0
        %v825 = vpop.f32.mrb[0].mxu0
        %v826 = vadd.f32 %v509, %v825
        %v827 = vpop.f32.mrb[0].mxu0
        %828 = vmatprep.mubr.bf16.mxu0 0
        %829 = vmatmul.mubr.bf16.gmra.mrb[0].mxu0 %v555
        %v830 = vpop.f32.mrb[0].mxu0
        %v831 = vadd.f32 %v509, %v830
        %v832 = vpop.f32.mrb[0].mxu0
        %v833 = vpop.f32.mrb[0].mxu0
        %v834 = vadd.f32 %v509, %v833
        %v835 = vpop.f32.mrb[0].mxu0
        %836 = vmatprep.mubr.bf16.mxu0 0
        %837 = vmatmul.mubr.bf16.gmra.mrb[0].mxu0 %v558
        %v838 = vpop.f32.mrb[0].mxu0
        %v839 = vadd.f32 %v509, %v838
        %v840 = vpop.f32.mrb[0].mxu0
        %v841 = vpop.f32.mrb[0].mxu0
        %v842 = vadd.f32 %v509, %v841
        %v843 = vpop.f32.mrb[0].mxu0
        %844 = vmatprep.mubr.bf16.mxu0 0
        %845 = vmatmul.mubr.bf16.gmra.mrb[0].mxu0 %v561
        %v846 = vpop.f32.mrb[0].mxu0
        %v847 = vadd.f32 %v509, %v846
        %v848 = vpop.f32.mrb[0].mxu0
        %v849 = vpop.f32.mrb[0].mxu0
        %v850 = vadd.f32 %v509, %v849
        %v851 = vpop.f32.mrb[0].mxu0
        %852 = vmatprep.mubr.bf16.mxu0 0
        %853 = vmatmul.mubr.bf16.gmra.mrb[0].mxu0 %v564
        %v854 = vpop.f32.mrb[0].mxu0
        %v855 = vadd.f32 %v509, %v854
        %v856 = vpop.f32.mrb[0].mxu0
        %v857 = vpop.f32.mrb[0].mxu0
        %v858 = vadd.f32 %v509, %v857
        %v859 = vpop.f32.mrb[0].mxu0
        %860 = vmatprep.mubr.bf16.mxu0 0
        %861 = vmatmul.mubr.bf16.gmra.mrb[0].mxu0 %v567
        %v862 = vpop.f32.mrb[0].mxu0
        %v863 = vadd.f32 %v509, %v862
        %v864 = vpop.f32.mrb[0].mxu0
        %v865 = vpop.f32.mrb[0].mxu0
        %v866 = vadd.f32 %v509, %v865
        %v867 = vpop.f32.mrb[0].mxu0
        %868 = vmatprep.mubr.bf16.mxu0 0
        %869 = vmatmul.mubr.bf16.gmra.mrb[0].mxu0 %v570
        %v870 = vpop.f32.mrb[0].mxu0
        %v871 = vadd.f32 %v509, %v870
        %v872 = vpop.f32.mrb[0].mxu0
        %v873 = vpop.f32.mrb[0].mxu0
        %v874 = vadd.f32 %v509, %v873
        %v875 = vpop.f32.mrb[0].mxu0
        %876 = vmatprep.mubr.bf16.mxu0 0
        %877 = vmatmul.mubr.bf16.gmra.mrb[0].mxu0 %v573
        %v878 = vpop.f32.mrb[0].mxu0
        %v879 = vadd.f32 %v509, %v878
        %v880 = vpop.f32.mrb[0].mxu0
        %v881 = vpop.f32.mrb[0].mxu0
        %v882 = vadd.f32 %v509, %v881
        %v883 = vpop.f32.mrb[0].mxu0
        %884 = vmatprep.mubr.bf16.mxu0 0
        %885 = vmatmul.mubr.bf16.gmra.mrb[0].mxu0 %v576
        %v886 = vpop.f32.mrb[0].mxu0
        %v887 = vadd.f32 %v509, %v886
        %v888 = vpop.f32.mrb[0].mxu0
        %v889 = vpop.f32.mrb[0].mxu0
        %v890 = vadd.f32 %v509, %v889
        %v891 = vpop.f32.mrb[0].mxu0
        %892 = vmatprep.mubr.bf16.mxu0 0
        %893 = vmatmul.mubr.bf16.gmra.mrb[0].mxu0 %v579
        %v894 = vpop.f32.mrb[0].mxu0
        %v895 = vadd.f32 %v509, %v894
        %v896 = vpop.f32.mrb[0].mxu0
        %v897 = vpop.f32.mrb[0].mxu0
        %v898 = vadd.f32 %v509, %v897
        %v899 = vpop.f32.mrb[0].mxu0
        %900 = vmatprep.mubr.bf16.mxu0 0
        %901 = vmatmul.mubr.bf16.gmra.mrb[0].mxu0 %v582
        %v902 = vpop.f32.mrb[0].mxu0
        %v903 = vadd.f32 %v509, %v902
        %v904 = vpop.f32.mrb[0].mxu0
        %v905 = vpop.f32.mrb[0].mxu0
        %v906 = vadd.f32 %v509, %v905
        %v907 = vpop.f32.mrb[0].mxu0
        %908 = vmatprep.mubr.bf16.mxu0 0
        %909 = vmatmul.mubr.bf16.gmra.mrb[0].mxu0 %v585
        %v910 = vpop.f32.mrb[0].mxu0
        %v911 = vadd.f32 %v509, %v910
        %v912 = vpop.f32.mrb[0].mxu0
        %v913 = vpop.f32.mrb[0].mxu0
        %v914 = vadd.f32 %v509, %v913
        %v915 = vpop.f32.mrb[0].mxu0
        %916 = vmatprep.mubr.bf16.mxu0 0
        %917 = vmatmul.mubr.bf16.gmra.mrb[0].mxu0 %v588
        %v918 = vpop.f32.mrb[0].mxu0
        %v919 = vadd.f32 %v509, %v918
        %v920 = vpop.f32.mrb[0].mxu0
        %v921 = vpop.f32.mrb[0].mxu0
        %v922 = vadd.f32 %v509, %v921
        %v923 = vpop.f32.mrb[0].mxu0
        %924 = vmatprep.mubr.bf16.mxu0 0
        %925 = vmatmul.mubr.bf16.gmra.mrb[0].mxu0 %v591
        %v926 = vpop.f32.mrb[0].mxu0
        %v927 = vadd.f32 %v509, %v926
        %v928 = vpop.f32.mrb[0].mxu0
        %v929 = vpop.f32.mrb[0].mxu0
        %v930 = vadd.f32 %v509, %v929
        %v931 = vpop.f32.mrb[0].mxu0
        %932 = vmatprep.mubr.bf16.mxu0 0
        %933 = vmatmul.mubr.bf16.gmra.mrb[0].mxu0 %v594
        %v934 = vpop.f32.mrb[0].mxu0
        %v935 = vadd.f32 %v509, %v934
        %v936 = vpop.f32.mrb[0].mxu0
        %v937 = vpop.f32.mrb[0].mxu0
        %v938 = vadd.f32 %v509, %v937
        %v939 = vpop.f32.mrb[0].mxu0
        %940 = vmatprep.mubr.bf16.mxu0 0
        %941 = vmatmul.mubr.bf16.gmra.mrb[0].mxu0 %v597
        %v942 = vpop.f32.mrb[0].mxu0
        %v943 = vadd.f32 %v509, %v942
        %v944 = vpop.f32.mrb[0].mxu0
        %v945 = vpop.f32.mrb[0].mxu0
        %v946 = vadd.f32 %v509, %v945
        %v947 = vpop.f32.mrb[0].mxu0
        %948 = vmatprep.mubr.bf16.mxu0 0
        %949 = vmatmul.mubr.bf16.gmra.mrb[0].mxu0 %v600
        %v950 = vpop.f32.mrb[0].mxu0
        %v951 = vadd.f32 %v509, %v950
        %v952 = vpop.f32.mrb[0].mxu0
        %v953 = vpop.f32.mrb[0].mxu0
        %v954 = vadd.f32 %v509, %v953
        %v955 = vpop.f32.mrb[0].mxu0
        %956 = vmatprep.mubr.bf16.mxu0 0
        %957 = vmatmul.mubr.bf16.gmra.mrb[0].mxu0 %v603
        %v958 = vpop.f32.mrb[0].mxu0
        %v959 = vadd.f32 %v509, %v958
        %v960 = vpop.f32.mrb[0].mxu0
        %v961 = vpop.f32.mrb[0].mxu0
        %v962 = vadd.f32 %v509, %v961
        %v963 = vpop.f32.mrb[0].mxu0
        %964 = vmatprep.mubr.bf16.mxu0 0
        %965 = vmatmul.mubr.bf16.gmra.mrb[0].mxu0 %v606
        %v966 = vpop.f32.mrb[0].mxu0
        %v967 = vadd.f32 %v509, %v966
        %v968 = vpop.f32.mrb[0].mxu0
        %v969 = vpop.f32.mrb[0].mxu0
        %v970 = vadd.f32 %v509, %v969
        %v971 = vpop.f32.mrb[0].mxu0
        %972 = vmatprep.mubr.bf16.mxu0 0
        %973 = vmatmul.mubr.bf16.gmra.mrb[0].mxu0 %v609
        %v974 = vpop.f32.mrb[0].mxu0
        %v975 = vadd.f32 %v509, %v974
        %v976 = vpop.f32.mrb[0].mxu0
        %v977 = vpop.f32.mrb[0].mxu0
        %v978 = vadd.f32 %v509, %v977
        %v979 = vpop.f32.mrb[0].mxu0
        %980 = vmatprep.mubr.bf16.mxu0 0
        %981 = vmatmul.mubr.bf16.gmra.mrb[0].mxu0 %v612
        %v982 = vpop.f32.mrb[0].mxu0
        %v983 = vadd.f32 %v509, %v982
        %v984 = vpop.f32.mrb[0].mxu0
        %v985 = vpop.f32.mrb[0].mxu0
        %v986 = vadd.f32 %v509, %v985
        %v987 = vpop.f32.mrb[0].mxu0
        %988 = vmatprep.mubr.bf16.mxu0 0
        %989 = vmatmul.mubr.bf16.gmra.mrb[0].mxu0 %v615
        %v990 = vpop.f32.mrb[0].mxu0
        %v991 = vadd.f32 %v509, %v990
        %v992 = vpop.f32.mrb[0].mxu0
        %v993 = vpop.f32.mrb[0].mxu0
        %v994 = vadd.f32 %v509, %v993
        %v995 = vpop.f32.mrb[0].mxu0
        %996 = vmatprep.mubr.bf16.mxu0 0
        %997 = vmatmul.mubr.bf16.gmra.mrb[0].mxu0 %v618
        %v998 = vpop.f32.mrb[0].mxu0
        %v999 = vadd.f32 %v509, %v998
        %v1000 = vpop.f32.mrb[0].mxu0
        %v1001 = vpop.f32.mrb[0].mxu0
        %v1002 = vadd.f32 %v509, %v1001
        %v1003 = vpop.f32.mrb[0].mxu0
        %1004 = vmatprep.mubr.bf16.mxu0 0
        %1005 = vmatmul.mubr.bf16.gmra.mrb[0].mxu0 %v621
        %v1006 = vpop.f32.mrb[0].mxu0
        %v1007 = vadd.f32 %v509, %v1006
        %v1008 = vpop.f32.mrb[0].mxu0
        %v1009 = vpop.f32.mrb[0].mxu0
        %v1010 = vadd.f32 %v509, %v1009
        %v1011 = vpop.f32.mrb[0].mxu0
        %1012 = vmatprep.mubr.bf16.mxu0 0
        %1013 = vmatmul.mubr.bf16.gmra.mrb[0].mxu0 %v624
        %v1014 = vpop.f32.mrb[0].mxu0
        %v1015 = vadd.f32 %v509, %v1014
        %v1016 = vpop.f32.mrb[0].mxu0
        %v1017 = vpop.f32.mrb[0].mxu0
        %v1018 = vadd.f32 %v509, %v1017
        %v1019 = vpop.f32.mrb[0].mxu0
        %1020 = vmatprep.mubr.bf16.mxu0 0
        %1021 = vmatmul.mubr.bf16.gmra.mrb[0].mxu0 %v627
        %v1022 = vpop.f32.mrb[0].mxu0
        %v1023 = vadd.f32 %v509, %v1022
        %v1024 = vpop.f32.mrb[0].mxu0
        %v1025 = vpop.f32.mrb[0].mxu0
        %v1026 = vadd.f32 %v509, %v1025
        %v1027 = vpop.f32.mrb[0].mxu0
        %1028 = vmatprep.mubr.bf16.mxu0 0
        %1029 = vmatmul.mubr.bf16.gmra.mrb[0].mxu0 %v630
        %v1030 = vpop.f32.mrb[0].mxu0
        %v1031 = vadd.f32 %v509, %v1030
        %v1032 = vpop.f32.mrb[0].mxu0
        %v1033 = vpop.f32.mrb[0].mxu0
        %v1034 = vadd.f32 %v509, %v1033
        %v1035 = vpop.f32.mrb[0].mxu0
        %1036 = vmatprep.mubr.bf16.mxu0 0
        %1037 = vmatmul.mubr.bf16.gmra.mrb[0].mxu0 %v633
        %v1038 = vpop.f32.mrb[0].mxu0
        %v1039 = vadd.f32 %v509, %v1038
        %v1040 = vpop.f32.mrb[0].mxu0
        %v1041 = vpop.f32.mrb[0].mxu0
        %v1042 = vadd.f32 %v509, %v1041
        %v1043 = vpop.f32.mrb[0].mxu0
        %1044 = vmatprep.mubr.bf16.mxu0 0
        %1045 = vmatmul.mubr.bf16.gmra.mrb[0].mxu0 %v636
        %v1046 = vpop.f32.mrb[0].mxu0
        %v1047 = vadd.f32 %v509, %v1046
        %v1048 = vpop.f32.mrb[0].mxu0
        %v1049 = vpop.f32.mrb[0].mxu0
        %v1050 = vadd.f32 %v509, %v1049
        %v1051 = vpop.f32.mrb[0].mxu0
        %1052 = vmatprep.mubr.bf16.mxu0 0
        %1053 = vmatmul.mubr.bf16.gmra.mrb[0].mxu0 %v639
        %v1054 = vpop.f32.mrb[0].mxu0
        %v1055 = vadd.f32 %v509, %v1054
        %v1056 = vpop.f32.mrb[0].mxu0
        %v1057 = vpop.f32.mrb[0].mxu0
        %v1058 = vadd.f32 %v509, %v1057
        %v1059 = vpop.f32.mrb[0].mxu0
        %1060 = vmatprep.mubr.bf16.mxu0 0
        %1061 = vmatmul.mubr.bf16.gmra.mrb[0].mxu0 %v642
        %v1062 = vpop.f32.mrb[0].mxu0
        %v1063 = vadd.f32 %v509, %v1062
        %v1064 = vpop.f32.mrb[0].mxu0
        %v1065 = vpop.f32.mrb[0].mxu0
        %v1066 = vadd.f32 %v509, %v1065
        %v1067 = vpop.f32.mrb[0].mxu0
        %1068 = vmatprep.mubr.bf16.mxu0 0
        %1069 = vmatmul.mubr.bf16.gmra.mrb[0].mxu0 %v645
        %v1070 = vpop.f32.mrb[0].mxu0
        %v1071 = vadd.f32 %v509, %v1070
        %v1072 = vpop.f32.mrb[0].mxu0
        %v1073 = vpop.f32.mrb[0].mxu0
        %v1074 = vadd.f32 %v509, %v1073
        %v1075 = vpop.f32.mrb[0].mxu0
        %1076 = vmatprep.mubr.bf16.mxu0 0
        %1077 = vmatmul.mubr.bf16.gmra.mrb[0].mxu0 %v648
        %v1078 = vpop.f32.mrb[0].mxu0
        %v1079 = vadd.f32 %v509, %v1078
        %v1080 = vpop.f32.mrb[0].mxu0
        %v1081 = vpop.f32.mrb[0].mxu0
        %v1082 = vadd.f32 %v509, %v1081
        %v1083 = vpop.f32.mrb[0].mxu0
        %1084 = vmatprep.mubr.bf16.mxu0 0
        %1085 = vmatmul.mubr.bf16.gmra.mrb[0].mxu0 %v651
        %v1086 = vpop.f32.mrb[0].mxu0
        %v1087 = vadd.f32 %v509, %v1086
        %v1088 = vpop.f32.mrb[0].mxu0
        %v1089 = vpop.f32.mrb[0].mxu0
        %v1090 = vadd.f32 %v509, %v1089
        %v1091 = vpop.f32.mrb[0].mxu0
        %1092 = vmatprep.mubr.bf16.mxu0 0
        %1093 = vmatmul.mubr.bf16.gmra.mrb[0].mxu0 %v654
        %v1094 = vpop.f32.mrb[0].mxu0
        %v1095 = vadd.f32 %v509, %v1094
        %v1096 = vpop.f32.mrb[0].mxu0
        %v1097 = vpop.f32.mrb[0].mxu0
        %v1098 = vadd.f32 %v509, %v1097
        %v1099 = vpop.f32.mrb[0].mxu0
        %1100 = vmatprep.mubr.bf16.mxu0 0
        %1101 = vmatmul.mubr.bf16.gmra.mrb[0].mxu0 %v657
        %v1102 = vpop.f32.mrb[0].mxu0
        %v1103 = vadd.f32 %v509, %v1102
        %v1104 = vpop.f32.mrb[0].mxu0
        %v1105 = vpop.f32.mrb[0].mxu0
        %v1106 = vadd.f32 %v509, %v1105
        %v1107 = vpop.f32.mrb[0].mxu0
        %1108 = vmatprep.mubr.bf16.mxu0 0
        %1109 = vmatmul.mubr.bf16.gmra.mrb[0].mxu0 %v660
        %v1110 = vpop.f32.mrb[0].mxu0
        %v1111 = vadd.f32 %v509, %v1110
        %v1112 = vpop.f32.mrb[0].mxu0
        %v1113 = vpop.f32.mrb[0].mxu0
        %v1114 = vadd.f32 %v509, %v1113
        %v1115 = vpop.f32.mrb[0].mxu0
        %1116 = vmatprep.mubr.bf16.mxu0 0
        %1117 = vmatmul.mubr.bf16.gmra.mrb[0].mxu0 %v663
        %v1118 = vpop.f32.mrb[0].mxu0
        %v1119 = vadd.f32 %v509, %v1118
        %v1120 = vpop.f32.mrb[0].mxu0
        %v1121 = vpop.f32.mrb[0].mxu0
        %v1122 = vadd.f32 %v509, %v1121
        %v1123 = vpop.f32.mrb[0].mxu0
        %1124 = vmatprep.mubr.bf16.mxu0 0
        %1125 = vmatmul.mubr.bf16.gmra.mrb[0].mxu0 %v666
        %v1126 = vpop.f32.mrb[0].mxu0
        %v1127 = vadd.f32 %v509, %v1126
        %v1128 = vpop.f32.mrb[0].mxu0
        %v1129 = vpop.f32.mrb[0].mxu0
        %v1130 = vadd.f32 %v509, %v1129
        %v1131 = vpop.f32.mrb[0].mxu0
        %1132 = vmatprep.mubr.bf16.mxu0 0
        %1133 = vmatmul.mubr.bf16.gmra.mrb[0].mxu0 %v669
        %v1134 = vpop.f32.mrb[0].mxu0
        %v1135 = vadd.f32 %v509, %v1134
        %v1136 = vpop.f32.mrb[0].mxu0
        %v1137 = vpop.f32.mrb[0].mxu0
        %v1138 = vadd.f32 %v509, %v1137
        %v1139 = vpop.f32.mrb[0].mxu0
        %1140 = vmatprep.mubr.bf16.mxu0 0
        %1141 = vmatmul.mubr.bf16.gmra.mrb[0].mxu0 %v672
        %v1142 = vpop.f32.mrb[0].mxu0
        %v1143 = vadd.f32 %v509, %v1142
        %v1144 = vpop.f32.mrb[0].mxu0
        %v1145 = vpop.f32.mrb[0].mxu0
        %v1146 = vadd.f32 %v509, %v1145
        %v1147 = vpop.f32.mrb[0].mxu0
        %1148 = vmatprep.mubr.bf16.mxu0 0
        %1149 = vmatmul.mubr.bf16.gmra.mrb[0].mxu0 %v675
        %v1150 = vpop.f32.mrb[0].mxu0
        %v1151 = vadd.f32 %v509, %v1150
        %v1152 = vpop.f32.mrb[0].mxu0
        %v1153 = vpop.f32.mrb[0].mxu0
        %v1154 = vadd.f32 %v509, %v1153
        %v1155 = vpop.f32.mrb[0].mxu0
        %1156 = vmatprep.mubr.bf16.mxu0 0
        %1157 = vmatmul.mubr.bf16.gmra.mrb[0].mxu0 %v678
        %v1158 = vpop.f32.mrb[0].mxu0
        %v1159 = vadd.f32 %v509, %v1158
        %v1160 = vpop.f32.mrb[0].mxu0
        %v1161 = vpop.f32.mrb[0].mxu0
        %v1162 = vadd.f32 %v509, %v1161
        %v1163 = vpop.f32.mrb[0].mxu0
        %1164 = vmatprep.mubr.bf16.mxu0 0
        %1165 = vmatmul.mubr.bf16.gmra.mrb[0].mxu0 %v681
        %v1166 = vpop.f32.mrb[0].mxu0
        %v1167 = vadd.f32 %v509, %v1166
        %v1168 = vpop.f32.mrb[0].mxu0
        %v1169 = vpop.f32.mrb[0].mxu0
        %v1170 = vadd.f32 %v509, %v1169
        %v1171 = vpop.f32.mrb[0].mxu0
        %1172 = vmatprep.mubr.bf16.mxu0 0
        %1173 = vmatmul.mubr.bf16.gmra.mrb[0].mxu0 %v684
        %v1174 = vpop.f32.mrb[0].mxu0
        %v1175 = vadd.f32 %v509, %v1174
        %v1176 = vpop.f32.mrb[0].mxu0
        %v1177 = vpop.f32.mrb[0].mxu0
        %v1178 = vadd.f32 %v509, %v1177
        %v1179 = vpop.f32.mrb[0].mxu0
        %1180 = vmatprep.mubr.bf16.mxu0 0
        %1181 = vmatmul.mubr.bf16.gmra.mrb[0].mxu0 %v687
        %v1182 = vpop.f32.mrb[0].mxu0
        %v1183 = vadd.f32 %v509, %v1182
        %v1184 = vpop.f32.mrb[0].mxu0
        %v1185 = vpop.f32.mrb[0].mxu0
        %v1186 = vadd.f32 %v509, %v1185
        %v1187 = vpop.f32.mrb[0].mxu0
        %1188 = vmatprep.mubr.bf16.mxu0 0
        %1189 = vmatmul.mubr.bf16.gmra.mrb[0].mxu0 %v690
        %v1190 = vpop.f32.mrb[0].mxu0
        %v1191 = vadd.f32 %v509, %v1190
        %v1192 = vpop.f32.mrb[0].mxu0
        %v1193 = vpop.f32.mrb[0].mxu0
        %v1194 = vadd.f32 %v509, %v1193
        %v1195 = vpop.f32.mrb[0].mxu0
        %1196 = vmatprep.mubr.bf16.mxu0 0
        %1197 = vmatmul.mubr.bf16.gmra.mrb[0].mxu0 %v693
        %v1198 = vpop.f32.mrb[0].mxu0
        %v1199 = vadd.f32 %v509, %v1198
        %v1200 = vpop.f32.mrb[0].mxu0
        %v1201 = vpop.f32.mrb[0].mxu0
        %v1202 = vadd.f32 %v509, %v1201
        %v1203 = vpop.f32.mrb[0].mxu0
        %1204 = vmatprep.mubr.bf16.mxu0 0
        %1205 = vmatmul.mubr.bf16.gmra.mrb[0].mxu0 %v696
        %v1206 = vpop.f32.mrb[0].mxu0
        %v1207 = vadd.f32 %v509, %v1206
        %v1208 = vpop.f32.mrb[0].mxu0
        %v1209 = vpop.f32.mrb[0].mxu0
        %v1210 = vadd.f32 %v509, %v1209
        %v1211 = vpop.f32.mrb[0].mxu0
        %1212 = vmatprep.mubr.bf16.mxu0 0
        %1213 = vmatmul.mubr.bf16.gmra.mrb[0].mxu0 %v699
        %v1214 = vpop.f32.mrb[0].mxu0
        %v1215 = vadd.f32 %v509, %v1214
        %v1216 = vpop.f32.mrb[0].mxu0
        %v1217 = vpop.f32.mrb[0].mxu0
        %v1218 = vadd.f32 %v509, %v1217
        %v1219 = vpop.f32.mrb[0].mxu0
        %1220 = vmatprep.mubr.bf16.mxu0 0
        %1221 = vmatmul.mubr.bf16.gmra.mrb[0].mxu0 %v702
        %v1222 = vpop.f32.mrb[0].mxu0
        %v1223 = vadd.f32 %v509, %v1222
        %v1224 = vpop.f32.mrb[0].mxu0
        %v1225 = vpop.f32.mrb[0].mxu0
        %v1226 = vadd.f32 %v509, %v1225
        %v1227 = vpop.f32.mrb[0].mxu0
        %1228 = vmatprep.mubr.bf16.mxu0 0
        %1229 = vmatmul.mubr.bf16.gmra.mrb[0].mxu0 %v705
        %v1230 = vpop.f32.mrb[0].mxu0
        %v1231 = vadd.f32 %v509, %v1230
        %v1232 = vpop.f32.mrb[0].mxu0
        %v1233 = vpop.f32.mrb[0].mxu0
        %v1234 = vadd.f32 %v509, %v1233
        %v1235 = vpop.f32.mrb[0].mxu0
        %1236 = vmatprep.mubr.bf16.mxu0 0
        %1237 = vmatmul.mubr.bf16.gmra.mrb[0].mxu0 %v708
        %v1238 = vpop.f32.mrb[0].mxu0
        %v1239 = vadd.f32 %v509, %v1238
        %v1240 = vpop.f32.mrb[0].mxu0
        %v1241 = vpop.f32.mrb[0].mxu0
        %v1242 = vadd.f32 %v509, %v1241
        %v1243 = vpop.f32.mrb[0].mxu0
        %1244 = vmatprep.mubr.bf16.mxu0 0
        %1245 = vmatmul.mubr.bf16.gmra.mrb[0].mxu0 %v711
        %v1246 = vpop.f32.mrb[0].mxu0
        %v1247 = vadd.f32 %v509, %v1246
        %v1248 = vpop.f32.mrb[0].mxu0
        %v1249 = vpop.f32.mrb[0].mxu0
        %v1250 = vadd.f32 %v509, %v1249
        %v1251 = vpop.f32.mrb[0].mxu0
        %1252 = vmatprep.mubr.bf16.mxu0 0
        %1253 = vmatmul.mubr.bf16.gmra.mrb[0].mxu0 %v714
        %v1254 = vpop.f32.mrb[0].mxu0
        %v1255 = vadd.f32 %v509, %v1254
        %v1256 = vpop.f32.mrb[0].mxu0
        %v1257 = vpop.f32.mrb[0].mxu0
        %v1258 = vadd.f32 %v509, %v1257
        %v1259 = vpop.f32.mrb[0].mxu0
        %1260 = vdwg.mxu0
        %v1261 = vmax.f32 %v751, 0.0
        %v1262 = vmax.f32 %v754, 0.0
        %v1263 = vmax.f32 %v759, 0.0
        %v1264 = vmax.f32 %v762, 0.0
        %v1265 = vmax.f32 %v767, 0.0
        %v1266 = vmax.f32 %v770, 0.0
        %v1267 = vmax.f32 %v775, 0.0
        %v1268 = vmax.f32 %v778, 0.0
        %v1269 = vmax.f32 %v783, 0.0
        %v1270 = vmax.f32 %v786, 0.0
        %v1271 = vmax.f32 %v791, 0.0
        %v1272 = vmax.f32 %v794, 0.0
        %v1273 = vmax.f32 %v799, 0.0
        %v1274 = vmax.f32 %v802, 0.0
        %v1275 = vmax.f32 %v807, 0.0
        %v1276 = vmax.f32 %v810, 0.0
        %v1277 = vmax.f32 %v815, 0.0
        %v1278 = vmax.f32 %v818, 0.0
        %v1279 = vmax.f32 %v823, 0.0
        %v1280 = vmax.f32 %v826, 0.0
        %v1281 = vmax.f32 %v831, 0.0
        %v1282 = vmax.f32 %v834, 0.0
        %v1283 = vmax.f32 %v839, 0.0
        %v1284 = vmax.f32 %v842, 0.0
        %v1285 = vmax.f32 %v847, 0.0
        %v1286 = vmax.f32 %v850, 0.0
        %v1287 = vmax.f32 %v855, 0.0
        %v1288 = vmax.f32 %v858, 0.0
        %v1289 = vmax.f32 %v863, 0.0
        %v1290 = vmax.f32 %v866, 0.0
        %v1291 = vmax.f32 %v871, 0.0
        %v1292 = vmax.f32 %v874, 0.0
        %v1293 = vmax.f32 %v879, 0.0
        %v1294 = vmax.f32 %v882, 0.0
        %v1295 = vmax.f32 %v887, 0.0
        %v1296 = vmax.f32 %v890, 0.0
        %v1297 = vmax.f32 %v895, 0.0
        %v1298 = vmax.f32 %v898, 0.0
        %v1299 = vmax.f32 %v903, 0.0
        %v1300 = vmax.f32 %v906, 0.0
        %v1301 = vmax.f32 %v911, 0.0
        %v1302 = vmax.f32 %v914, 0.0
        %v1303 = vmax.f32 %v919, 0.0
        %v1304 = vmax.f32 %v922, 0.0
        %v1305 = vmax.f32 %v927, 0.0
        %v1306 = vmax.f32 %v930, 0.0
        %v1307 = vmax.f32 %v935, 0.0
        %v1308 = vmax.f32 %v938, 0.0
        %v1309 = vmax.f32 %v943, 0.0
        %v1310 = vmax.f32 %v946, 0.0
        %v1311 = vmax.f32 %v951, 0.0
        %v1312 = vmax.f32 %v954, 0.0
        %v1313 = vmax.f32 %v959, 0.0
        %v1314 = vmax.f32 %v962, 0.0
        %v1315 = vmax.f32 %v967, 0.0
        %v1316 = vmax.f32 %v970, 0.0
        %v1317 = vmax.f32 %v975, 0.0
        %v1318 = vmax.f32 %v978, 0.0
        %v1319 = vmax.f32 %v983, 0.0
        %v1320 = vmax.f32 %v986, 0.0
        %v1321 = vmax.f32 %v991, 0.0
        %v1322 = vmax.f32 %v994, 0.0
        %v1323 = vmax.f32 %v999, 0.0
        %v1324 = vmax.f32 %v1002, 0.0
        %v1325 = vmax.f32 %v1007, 0.0
        %v1326 = vmax.f32 %v1010, 0.0
        %v1327 = vmax.f32 %v1015, 0.0
        %v1328 = vmax.f32 %v1018, 0.0
        %v1329 = vmax.f32 %v1023, 0.0
        %v1330 = vmax.f32 %v1026, 0.0
        %v1331 = vmax.f32 %v1031, 0.0
        %v1332 = vmax.f32 %v1034, 0.0
        %v1333 = vmax.f32 %v1039, 0.0
        %v1334 = vmax.f32 %v1042, 0.0
        %v1335 = vmax.f32 %v1047, 0.0
        %v1336 = vmax.f32 %v1050, 0.0
        %v1337 = vmax.f32 %v1055, 0.0
        %v1338 = vmax.f32 %v1058, 0.0
        %v1339 = vmax.f32 %v1063, 0.0
        %v1340 = vmax.f32 %v1066, 0.0
        %v1341 = vmax.f32 %v1071, 0.0
        %v1342 = vmax.f32 %v1074, 0.0
        %v1343 = vmax.f32 %v1079, 0.0
        %v1344 = vmax.f32 %v1082, 0.0
        %v1345 = vmax.f32 %v1087, 0.0
        %v1346 = vmax.f32 %v1090, 0.0
        %v1347 = vmax.f32 %v1095, 0.0
        %v1348 = vmax.f32 %v1098, 0.0
        %v1349 = vmax.f32 %v1103, 0.0
        %v1350 = vmax.f32 %v1106, 0.0
        %v1351 = vmax.f32 %v1111, 0.0
        %v1352 = vmax.f32 %v1114, 0.0
        %v1353 = vmax.f32 %v1119, 0.0
        %v1354 = vmax.f32 %v1122, 0.0
        %v1355 = vmax.f32 %v1127, 0.0
        %v1356 = vmax.f32 %v1130, 0.0
        %v1357 = vmax.f32 %v1135, 0.0
        %v1358 = vmax.f32 %v1138, 0.0
        %v1359 = vmax.f32 %v1143, 0.0
        %v1360 = vmax.f32 %v1146, 0.0
        %v1361 = vmax.f32 %v1151, 0.0
        %v1362 = vmax.f32 %v1154, 0.0
        %v1363 = vmax.f32 %v1159, 0.0
        %v1364 = vmax.f32 %v1162, 0.0
        %v1365 = vmax.f32 %v1167, 0.0
        %v1366 = vmax.f32 %v1170, 0.0
        %v1367 = vmax.f32 %v1175, 0.0
        %v1368 = vmax.f32 %v1178, 0.0
        %v1369 = vmax.f32 %v1183, 0.0
        %v1370 = vmax.f32 %v1186, 0.0
        %v1371 = vmax.f32 %v1191, 0.0
        %v1372 = vmax.f32 %v1194, 0.0
        %v1373 = vmax.f32 %v1199, 0.0
        %v1374 = vmax.f32 %v1202, 0.0
        %v1375 = vmax.f32 %v1207, 0.0
        %v1376 = vmax.f32 %v1210, 0.0
        %v1377 = vmax.f32 %v1215, 0.0
        %v1378 = vmax.f32 %v1218, 0.0
        %v1379 = vmax.f32 %v1223, 0.0
        %v1380 = vmax.f32 %v1226, 0.0
        %v1381 = vmax.f32 %v1231, 0.0
        %v1382 = vmax.f32 %v1234, 0.0
        %v1383 = vmax.f32 %v1239, 0.0
        %v1384 = vmax.f32 %v1242, 0.0
        %v1385 = vmax.f32 %v1247, 0.0
        %v1386 = vmax.f32 %v1250, 0.0
        %v1387 = vmax.f32 %v1255, 0.0
        %v1388 = vmax.f32 %v1258, 0.0
        %v1389 = vpack.c.bf16 %v1262, %v1261
        %v1390 = vpack.c.bf16 %v1264, %v1263
        %v1391 = vpack.c.bf16 %v1266, %v1265
        %v1392 = vpack.c.bf16 %v1268, %v1267
        %v1393 = vpack.c.bf16 %v1270, %v1269
        %v1394 = vpack.c.bf16 %v1272, %v1271
        %v1395 = vpack.c.bf16 %v1274, %v1273
        %v1396 = vpack.c.bf16 %v1276, %v1275
        %v1397 = vpack.c.bf16 %v1278, %v1277
        %v1398 = vpack.c.bf16 %v1280, %v1279
        %v1399 = vpack.c.bf16 %v1282, %v1281
        %v1400 = vpack.c.bf16 %v1284, %v1283
        %v1401 = vpack.c.bf16 %v1286, %v1285
        %v1402 = vpack.c.bf16 %v1288, %v1287
        %v1403 = vpack.c.bf16 %v1290, %v1289
        %v1404 = vpack.c.bf16 %v1292, %v1291
        %v1405 = vpack.c.bf16 %v1294, %v1293
        %v1406 = vpack.c.bf16 %v1296, %v1295
        %v1407 = vpack.c.bf16 %v1298, %v1297
        %v1408 = vpack.c.bf16 %v1300, %v1299
        %v1409 = vpack.c.bf16 %v1302, %v1301
        %v1410 = vpack.c.bf16 %v1304, %v1303
        %v1411 = vpack.c.bf16 %v1306, %v1305
        %v1412 = vpack.c.bf16 %v1308, %v1307
        %v1413 = vpack.c.bf16 %v1310, %v1309
        %v1414 = vpack.c.bf16 %v1312, %v1311
        %v1415 = vpack.c.bf16 %v1314, %v1313
        %v1416 = vpack.c.bf16 %v1316, %v1315
        %v1417 = vpack.c.bf16 %v1318, %v1317
        %v1418 = vpack.c.bf16 %v1320, %v1319
        %v1419 = vpack.c.bf16 %v1322, %v1321
        %v1420 = vpack.c.bf16 %v1324, %v1323
        %v1421 = vpack.c.bf16 %v1326, %v1325
        %v1422 = vpack.c.bf16 %v1328, %v1327
        %v1423 = vpack.c.bf16 %v1330, %v1329
        %v1424 = vpack.c.bf16 %v1332, %v1331
        %v1425 = vpack.c.bf16 %v1334, %v1333
        %v1426 = vpack.c.bf16 %v1336, %v1335
        %v1427 = vpack.c.bf16 %v1338, %v1337
        %v1428 = vpack.c.bf16 %v1340, %v1339
        %v1429 = vpack.c.bf16 %v1342, %v1341
        %v1430 = vpack.c.bf16 %v1344, %v1343
        %v1431 = vpack.c.bf16 %v1346, %v1345
        %v1432 = vpack.c.bf16 %v1348, %v1347
        %v1433 = vpack.c.bf16 %v1350, %v1349
        %v1434 = vpack.c.bf16 %v1352, %v1351
        %v1435 = vpack.c.bf16 %v1354, %v1353
        %v1436 = vpack.c.bf16 %v1356, %v1355
        %v1437 = vpack.c.bf16 %v1358, %v1357
        %v1438 = vpack.c.bf16 %v1360, %v1359
        %v1439 = vpack.c.bf16 %v1362, %v1361
        %v1440 = vpack.c.bf16 %v1364, %v1363
        %v1441 = vpack.c.bf16 %v1366, %v1365
        %v1442 = vpack.c.bf16 %v1368, %v1367
        %v1443 = vpack.c.bf16 %v1370, %v1369
        %v1444 = vpack.c.bf16 %v1372, %v1371
        %v1445 = vpack.c.bf16 %v1374, %v1373
        %v1446 = vpack.c.bf16 %v1376, %v1375
        %v1447 = vpack.c.bf16 %v1378, %v1377
        %v1448 = vpack.c.bf16 %v1380, %v1379
        %v1449 = vpack.c.bf16 %v1382, %v1381
        %v1450 = vpack.c.bf16 %v1384, %v1383
        %v1451 = vpack.c.bf16 %v1386, %v1385
        %v1452 = vpack.c.bf16 %v1388, %v1387
        %v1453 = vld [vmem:[%s3] sm:$0xf]
        %v1454 = vld [vmem:[%s3 + $0x4] sm:$0xf]
        %v1455 = vld [vmem:[%s3 + $0x8] sm:$0xf]
        %v1456 = vld [vmem:[%s3 + $0xc] sm:$0xf]
        %v1457 = vld [vmem:[%s3 + $0x10] sm:$0xf]
        %v1458 = vld [vmem:[%s3 + $0x14] sm:$0xf]
        %v1459 = vld [vmem:[%s3 + $0x18] sm:$0xf]
        %v1460 = vld [vmem:[%s3 + $0x1c] sm:$0xf]
        %v1461 = vld [vmem:[%s3 + $0x20] sm:$0xf]
        %v1462 = vld [vmem:[%s3 + $0x24] sm:$0xf]
        %v1463 = vld [vmem:[%s3 + $0x28] sm:$0xf]
        %v1464 = vld [vmem:[%s3 + $0x2c] sm:$0xf]
        %v1465 = vld [vmem:[%s3 + $0x30] sm:$0xf]
        %v1466 = vld [vmem:[%s3 + $0x34] sm:$0xf]
        %v1467 = vld [vmem:[%s3 + $0x38] sm:$0xf]
        %v1468 = vld [vmem:[%s3 + $0x3c] sm:$0xf]
        %v1469 = vld [vmem:[%s4] sm:$0x1]
        %v1471 = vlaneseq
        %v1472 = vshrl.u32 %v1471, 7
        %v1473 = vsub.s32 0, %v1472
        %v1474 = vrot.slane %v1469, %v1473
        %v1492 = vunpack.c.l.b16 %v1453
        %v1493 = vunpack.c.l.b16 %v1454
        %v1494 = vunpack.c.l.b16 %v1455
        %v1495 = vunpack.c.l.b16 %v1456
        %v1496 = vunpack.c.l.b16 %v1457
        %v1497 = vunpack.c.l.b16 %v1458
        %v1498 = vunpack.c.l.b16 %v1459
        %v1499 = vunpack.c.l.b16 %v1460
        %v1500 = vunpack.c.l.b16 %v1461
        %v1501 = vunpack.c.l.b16 %v1462
        %v1502 = vunpack.c.l.b16 %v1463
        %v1503 = vunpack.c.l.b16 %v1464
        %v1504 = vunpack.c.l.b16 %v1465
        %v1505 = vunpack.c.l.b16 %v1466
        %v1506 = vunpack.c.l.b16 %v1467
        %v1507 = vunpack.c.l.b16 %v1468
        %v1508 = vpack.c.b16 %v1493, %v1492
        %v1509 = vpack.c.b16 %v1495, %v1494
        %v1510 = vpack.c.b16 %v1497, %v1496
        %v1511 = vpack.c.b16 %v1499, %v1498
        %v1512 = vpack.c.b16 %v1501, %v1500
        %v1513 = vpack.c.b16 %v1503, %v1502
        %v1514 = vpack.c.b16 %v1505, %v1504
        %v1515 = vpack.c.b16 %v1507, %v1506
        %1524 = vmatprep.subr.bf16.mxu0 0
        %1525 = vmatpush1.bf16.msra.mxu0 %v1508
        %1526 = vmatprep.subr.bf16.mxu0 0
        %1527 = vmatpush1.bf16.msra.mxu0 %v1509
        %1528 = vmatprep.subr.bf16.mxu0 0
        %1529 = vmatpush1.bf16.msra.mxu0 %v1510
        %1530 = vmatprep.subr.bf16.mxu0 0
        %1531 = vmatpush1.bf16.msra.mxu0 %v1511
        %1532 = vmatprep.subr.bf16.mxu0 0
        %1533 = vmatpush1.bf16.msra.mxu0 %v1512
        %1534 = vmatprep.subr.bf16.mxu0 0
        %1535 = vmatpush1.bf16.msra.mxu0 %v1513
        %1536 = vmatprep.subr.bf16.mxu0 0
        %1537 = vmatpush1.bf16.msra.mxu0 %v1514
        %1538 = vmatprep.subr.bf16.mxu0 0
        %1539 = vmatpush1.bf16.msra.mxu0 %v1515
        %1540 = vmatprep.subr.bf16.mxu0 0
        %1541 = vmatpush1.bf16.msra.mxu0 0
        %1542 = vmatprep.subr.bf16.mxu0 0
        %1543 = vmatpush1.bf16.msra.mxu0 0
        %1544 = vmatprep.subr.bf16.mxu0 0
        %1545 = vmatpush1.bf16.msra.mxu0 0
        %1546 = vmatprep.subr.bf16.mxu0 0
        %1547 = vmatpush1.bf16.msra.mxu0 0
        %1548 = vmatprep.subr.bf16.mxu0 0
        %1549 = vmatpush1.bf16.msra.mxu0 0
        %1550 = vmatprep.subr.bf16.mxu0 0
        %1551 = vmatpush1.bf16.msra.mxu0 0
        %1552 = vmatprep.subr.bf16.mxu0 0
        %1553 = vmatpush1.bf16.msra.mxu0 0
        %1554 = vmatprep.subr.bf16.mxu0 0
        %1555 = vmatpush1.bf16.msra.mxu0 0
        %1556 = vmatprep.mubr.bf16.mxu0 0
        %1557 = vmatmul.mubr.bf16.gmra.mrb[0].mxu0 %v1389
        %v1558 = vpop.f32.mrb[0].mxu0
        %v1559 = vadd.f32 %v1474, %v1558
        %v1560 = vpop.f32.mrb[0].mxu0
        %v1561 = vpop.f32.mrb[0].mxu0
        %v1562 = vadd.f32 %v1474, %v1561
        %v1563 = vpop.f32.mrb[0].mxu0
        %1564 = vmatprep.mubr.bf16.mxu0 0
        %1565 = vmatmul.mubr.bf16.gmra.mrb[0].mxu0 %v1390
        %v1566 = vpop.f32.mrb[0].mxu0
        %v1567 = vadd.f32 %v1474, %v1566
        %v1568 = vpop.f32.mrb[0].mxu0
        %v1569 = vpop.f32.mrb[0].mxu0
        %v1570 = vadd.f32 %v1474, %v1569
        %v1571 = vpop.f32.mrb[0].mxu0
        %1572 = vmatprep.mubr.bf16.mxu0 0
        %1573 = vmatmul.mubr.bf16.gmra.mrb[0].mxu0 %v1391
        %v1574 = vpop.f32.mrb[0].mxu0
        %v1575 = vadd.f32 %v1474, %v1574
        %v1576 = vpop.f32.mrb[0].mxu0
        %v1577 = vpop.f32.mrb[0].mxu0
        %v1578 = vadd.f32 %v1474, %v1577
        %v1579 = vpop.f32.mrb[0].mxu0
        %1580 = vmatprep.mubr.bf16.mxu0 0
        %1581 = vmatmul.mubr.bf16.gmra.mrb[0].mxu0 %v1392
        %v1582 = vpop.f32.mrb[0].mxu0
        %v1583 = vadd.f32 %v1474, %v1582
        %v1584 = vpop.f32.mrb[0].mxu0
        %v1585 = vpop.f32.mrb[0].mxu0
        %v1586 = vadd.f32 %v1474, %v1585
        %v1587 = vpop.f32.mrb[0].mxu0
        %1588 = vmatprep.mubr.bf16.mxu0 0
        %1589 = vmatmul.mubr.bf16.gmra.mrb[0].mxu0 %v1393
        %v1590 = vpop.f32.mrb[0].mxu0
        %v1591 = vadd.f32 %v1474, %v1590
        %v1592 = vpop.f32.mrb[0].mxu0
        %v1593 = vpop.f32.mrb[0].mxu0
        %v1594 = vadd.f32 %v1474, %v1593
        %v1595 = vpop.f32.mrb[0].mxu0
        %1596 = vmatprep.mubr.bf16.mxu0 0
        %1597 = vmatmul.mubr.bf16.gmra.mrb[0].mxu0 %v1394
        %v1598 = vpop.f32.mrb[0].mxu0
        %v1599 = vadd.f32 %v1474, %v1598
        %v1600 = vpop.f32.mrb[0].mxu0
        %v1601 = vpop.f32.mrb[0].mxu0
        %v1602 = vadd.f32 %v1474, %v1601
        %v1603 = vpop.f32.mrb[0].mxu0
        %1604 = vmatprep.mubr.bf16.mxu0 0
        %1605 = vmatmul.mubr.bf16.gmra.mrb[0].mxu0 %v1395
        %v1606 = vpop.f32.mrb[0].mxu0
        %v1607 = vadd.f32 %v1474, %v1606
        %v1608 = vpop.f32.mrb[0].mxu0
        %v1609 = vpop.f32.mrb[0].mxu0
        %v1610 = vadd.f32 %v1474, %v1609
        %v1611 = vpop.f32.mrb[0].mxu0
        %1612 = vmatprep.mubr.bf16.mxu0 0
        %1613 = vmatmul.mubr.bf16.gmra.mrb[0].mxu0 %v1396
        %v1614 = vpop.f32.mrb[0].mxu0
        %v1615 = vadd.f32 %v1474, %v1614
        %v1616 = vpop.f32.mrb[0].mxu0
        %v1617 = vpop.f32.mrb[0].mxu0
        %v1618 = vadd.f32 %v1474, %v1617
        %v1619 = vpop.f32.mrb[0].mxu0
        %1620 = vmatprep.mubr.bf16.mxu0 0
        %1621 = vmatmul.mubr.bf16.gmra.mrb[0].mxu0 %v1397
        %v1622 = vpop.f32.mrb[0].mxu0
        %v1623 = vadd.f32 %v1474, %v1622
        %v1624 = vpop.f32.mrb[0].mxu0
        %v1625 = vpop.f32.mrb[0].mxu0
        %v1626 = vadd.f32 %v1474, %v1625
        %v1627 = vpop.f32.mrb[0].mxu0
        %1628 = vmatprep.mubr.bf16.mxu0 0
        %1629 = vmatmul.mubr.bf16.gmra.mrb[0].mxu0 %v1398
        %v1630 = vpop.f32.mrb[0].mxu0
        %v1631 = vadd.f32 %v1474, %v1630
        %v1632 = vpop.f32.mrb[0].mxu0
        %v1633 = vpop.f32.mrb[0].mxu0
        %v1634 = vadd.f32 %v1474, %v1633
        %v1635 = vpop.f32.mrb[0].mxu0
        %1636 = vmatprep.mubr.bf16.mxu0 0
        %1637 = vmatmul.mubr.bf16.gmra.mrb[0].mxu0 %v1399
        %v1638 = vpop.f32.mrb[0].mxu0
        %v1639 = vadd.f32 %v1474, %v1638
        %v1640 = vpop.f32.mrb[0].mxu0
        %v1641 = vpop.f32.mrb[0].mxu0
        %v1642 = vadd.f32 %v1474, %v1641
        %v1643 = vpop.f32.mrb[0].mxu0
        %1644 = vmatprep.mubr.bf16.mxu0 0
        %1645 = vmatmul.mubr.bf16.gmra.mrb[0].mxu0 %v1400
        %v1646 = vpop.f32.mrb[0].mxu0
        %v1647 = vadd.f32 %v1474, %v1646
        %v1648 = vpop.f32.mrb[0].mxu0
        %v1649 = vpop.f32.mrb[0].mxu0
        %v1650 = vadd.f32 %v1474, %v1649
        %v1651 = vpop.f32.mrb[0].mxu0
        %1652 = vmatprep.mubr.bf16.mxu0 0
        %1653 = vmatmul.mubr.bf16.gmra.mrb[0].mxu0 %v1401
        %v1654 = vpop.f32.mrb[0].mxu0
        %v1655 = vadd.f32 %v1474, %v1654
        %v1656 = vpop.f32.mrb[0].mxu0
        %v1657 = vpop.f32.mrb[0].mxu0
        %v1658 = vadd.f32 %v1474, %v1657
        %v1659 = vpop.f32.mrb[0].mxu0
        %1660 = vmatprep.mubr.bf16.mxu0 0
        %1661 = vmatmul.mubr.bf16.gmra.mrb[0].mxu0 %v1402
        %v1662 = vpop.f32.mrb[0].mxu0
        %v1663 = vadd.f32 %v1474, %v1662
        %v1664 = vpop.f32.mrb[0].mxu0
        %v1665 = vpop.f32.mrb[0].mxu0
        %v1666 = vadd.f32 %v1474, %v1665
        %v1667 = vpop.f32.mrb[0].mxu0
        %1668 = vmatprep.mubr.bf16.mxu0 0
        %1669 = vmatmul.mubr.bf16.gmra.mrb[0].mxu0 %v1403
        %v1670 = vpop.f32.mrb[0].mxu0
        %v1671 = vadd.f32 %v1474, %v1670
        %v1672 = vpop.f32.mrb[0].mxu0
        %v1673 = vpop.f32.mrb[0].mxu0
        %v1674 = vadd.f32 %v1474, %v1673
        %v1675 = vpop.f32.mrb[0].mxu0
        %1676 = vmatprep.mubr.bf16.mxu0 0
        %1677 = vmatmul.mubr.bf16.gmra.mrb[0].mxu0 %v1404
        %v1678 = vpop.f32.mrb[0].mxu0
        %v1679 = vadd.f32 %v1474, %v1678
        %v1680 = vpop.f32.mrb[0].mxu0
        %v1681 = vpop.f32.mrb[0].mxu0
        %v1682 = vadd.f32 %v1474, %v1681
        %v1683 = vpop.f32.mrb[0].mxu0
        %1684 = vmatprep.mubr.bf16.mxu0 0
        %1685 = vmatmul.mubr.bf16.gmra.mrb[0].mxu0 %v1405
        %v1686 = vpop.f32.mrb[0].mxu0
        %v1687 = vadd.f32 %v1474, %v1686
        %v1688 = vpop.f32.mrb[0].mxu0
        %v1689 = vpop.f32.mrb[0].mxu0
        %v1690 = vadd.f32 %v1474, %v1689
        %v1691 = vpop.f32.mrb[0].mxu0
        %1692 = vmatprep.mubr.bf16.mxu0 0
        %1693 = vmatmul.mubr.bf16.gmra.mrb[0].mxu0 %v1406
        %v1694 = vpop.f32.mrb[0].mxu0
        %v1695 = vadd.f32 %v1474, %v1694
        %v1696 = vpop.f32.mrb[0].mxu0
        %v1697 = vpop.f32.mrb[0].mxu0
        %v1698 = vadd.f32 %v1474, %v1697
        %v1699 = vpop.f32.mrb[0].mxu0
        %1700 = vmatprep.mubr.bf16.mxu0 0
        %1701 = vmatmul.mubr.bf16.gmra.mrb[0].mxu0 %v1407
        %v1702 = vpop.f32.mrb[0].mxu0
        %v1703 = vadd.f32 %v1474, %v1702
        %v1704 = vpop.f32.mrb[0].mxu0
        %v1705 = vpop.f32.mrb[0].mxu0
        %v1706 = vadd.f32 %v1474, %v1705
        %v1707 = vpop.f32.mrb[0].mxu0
        %1708 = vmatprep.mubr.bf16.mxu0 0
        %1709 = vmatmul.mubr.bf16.gmra.mrb[0].mxu0 %v1408
        %v1710 = vpop.f32.mrb[0].mxu0
        %v1711 = vadd.f32 %v1474, %v1710
        %v1712 = vpop.f32.mrb[0].mxu0
        %v1713 = vpop.f32.mrb[0].mxu0
        %v1714 = vadd.f32 %v1474, %v1713
        %v1715 = vpop.f32.mrb[0].mxu0
        %1716 = vmatprep.mubr.bf16.mxu0 0
        %1717 = vmatmul.mubr.bf16.gmra.mrb[0].mxu0 %v1409
        %v1718 = vpop.f32.mrb[0].mxu0
        %v1719 = vadd.f32 %v1474, %v1718
        %v1720 = vpop.f32.mrb[0].mxu0
        %v1721 = vpop.f32.mrb[0].mxu0
        %v1722 = vadd.f32 %v1474, %v1721
        %v1723 = vpop.f32.mrb[0].mxu0
        %1724 = vmatprep.mubr.bf16.mxu0 0
        %1725 = vmatmul.mubr.bf16.gmra.mrb[0].mxu0 %v1410
        %v1726 = vpop.f32.mrb[0].mxu0
        %v1727 = vadd.f32 %v1474, %v1726
        %v1728 = vpop.f32.mrb[0].mxu0
        %v1729 = vpop.f32.mrb[0].mxu0
        %v1730 = vadd.f32 %v1474, %v1729
        %v1731 = vpop.f32.mrb[0].mxu0
        %1732 = vmatprep.mubr.bf16.mxu0 0
        %1733 = vmatmul.mubr.bf16.gmra.mrb[0].mxu0 %v1411
        %v1734 = vpop.f32.mrb[0].mxu0
        %v1735 = vadd.f32 %v1474, %v1734
        %v1736 = vpop.f32.mrb[0].mxu0
        %v1737 = vpop.f32.mrb[0].mxu0
        %v1738 = vadd.f32 %v1474, %v1737
        %v1739 = vpop.f32.mrb[0].mxu0
        %1740 = vmatprep.mubr.bf16.mxu0 0
        %1741 = vmatmul.mubr.bf16.gmra.mrb[0].mxu0 %v1412
        %v1742 = vpop.f32.mrb[0].mxu0
        %v1743 = vadd.f32 %v1474, %v1742
        %v1744 = vpop.f32.mrb[0].mxu0
        %v1745 = vpop.f32.mrb[0].mxu0
        %v1746 = vadd.f32 %v1474, %v1745
        %v1747 = vpop.f32.mrb[0].mxu0
        %1748 = vmatprep.mubr.bf16.mxu0 0
        %1749 = vmatmul.mubr.bf16.gmra.mrb[0].mxu0 %v1413
        %v1750 = vpop.f32.mrb[0].mxu0
        %v1751 = vadd.f32 %v1474, %v1750
        %v1752 = vpop.f32.mrb[0].mxu0
        %v1753 = vpop.f32.mrb[0].mxu0
        %v1754 = vadd.f32 %v1474, %v1753
        %v1755 = vpop.f32.mrb[0].mxu0
        %1756 = vmatprep.mubr.bf16.mxu0 0
        %1757 = vmatmul.mubr.bf16.gmra.mrb[0].mxu0 %v1414
        %v1758 = vpop.f32.mrb[0].mxu0
        %v1759 = vadd.f32 %v1474, %v1758
        %v1760 = vpop.f32.mrb[0].mxu0
        %v1761 = vpop.f32.mrb[0].mxu0
        %v1762 = vadd.f32 %v1474, %v1761
        %v1763 = vpop.f32.mrb[0].mxu0
        %1764 = vmatprep.mubr.bf16.mxu0 0
        %1765 = vmatmul.mubr.bf16.gmra.mrb[0].mxu0 %v1415
        %v1766 = vpop.f32.mrb[0].mxu0
        %v1767 = vadd.f32 %v1474, %v1766
        %v1768 = vpop.f32.mrb[0].mxu0
        %v1769 = vpop.f32.mrb[0].mxu0
        %v1770 = vadd.f32 %v1474, %v1769
        %v1771 = vpop.f32.mrb[0].mxu0
        %1772 = vmatprep.mubr.bf16.mxu0 0
        %1773 = vmatmul.mubr.bf16.gmra.mrb[0].mxu0 %v1416
        %v1774 = vpop.f32.mrb[0].mxu0
        %v1775 = vadd.f32 %v1474, %v1774
        %v1776 = vpop.f32.mrb[0].mxu0
        %v1777 = vpop.f32.mrb[0].mxu0
        %v1778 = vadd.f32 %v1474, %v1777
        %v1779 = vpop.f32.mrb[0].mxu0
        %1780 = vmatprep.mubr.bf16.mxu0 0
        %1781 = vmatmul.mubr.bf16.gmra.mrb[0].mxu0 %v1417
        %v1782 = vpop.f32.mrb[0].mxu0
        %v1783 = vadd.f32 %v1474, %v1782
        %v1784 = vpop.f32.mrb[0].mxu0
        %v1785 = vpop.f32.mrb[0].mxu0
        %v1786 = vadd.f32 %v1474, %v1785
        %v1787 = vpop.f32.mrb[0].mxu0
        %1788 = vmatprep.mubr.bf16.mxu0 0
        %1789 = vmatmul.mubr.bf16.gmra.mrb[0].mxu0 %v1418
        %v1790 = vpop.f32.mrb[0].mxu0
        %v1791 = vadd.f32 %v1474, %v1790
        %v1792 = vpop.f32.mrb[0].mxu0
        %v1793 = vpop.f32.mrb[0].mxu0
        %v1794 = vadd.f32 %v1474, %v1793
        %v1795 = vpop.f32.mrb[0].mxu0
        %1796 = vmatprep.mubr.bf16.mxu0 0
        %1797 = vmatmul.mubr.bf16.gmra.mrb[0].mxu0 %v1419
        %v1798 = vpop.f32.mrb[0].mxu0
        %v1799 = vadd.f32 %v1474, %v1798
        %v1800 = vpop.f32.mrb[0].mxu0
        %v1801 = vpop.f32.mrb[0].mxu0
        %v1802 = vadd.f32 %v1474, %v1801
        %v1803 = vpop.f32.mrb[0].mxu0
        %1804 = vmatprep.mubr.bf16.mxu0 0
        %1805 = vmatmul.mubr.bf16.gmra.mrb[0].mxu0 %v1420
        %v1806 = vpop.f32.mrb[0].mxu0
        %v1807 = vadd.f32 %v1474, %v1806
        %v1808 = vpop.f32.mrb[0].mxu0
        %v1809 = vpop.f32.mrb[0].mxu0
        %v1810 = vadd.f32 %v1474, %v1809
        %v1811 = vpop.f32.mrb[0].mxu0
        %1812 = vmatprep.mubr.bf16.mxu0 0
        %1813 = vmatmul.mubr.bf16.gmra.mrb[0].mxu0 %v1421
        %v1814 = vpop.f32.mrb[0].mxu0
        %v1815 = vadd.f32 %v1474, %v1814
        %v1816 = vpop.f32.mrb[0].mxu0
        %v1817 = vpop.f32.mrb[0].mxu0
        %v1818 = vadd.f32 %v1474, %v1817
        %v1819 = vpop.f32.mrb[0].mxu0
        %1820 = vmatprep.mubr.bf16.mxu0 0
        %1821 = vmatmul.mubr.bf16.gmra.mrb[0].mxu0 %v1422
        %v1822 = vpop.f32.mrb[0].mxu0
        %v1823 = vadd.f32 %v1474, %v1822
        %v1824 = vpop.f32.mrb[0].mxu0
        %v1825 = vpop.f32.mrb[0].mxu0
        %v1826 = vadd.f32 %v1474, %v1825
        %v1827 = vpop.f32.mrb[0].mxu0
        %1828 = vmatprep.mubr.bf16.mxu0 0
        %1829 = vmatmul.mubr.bf16.gmra.mrb[0].mxu0 %v1423
        %v1830 = vpop.f32.mrb[0].mxu0
        %v1831 = vadd.f32 %v1474, %v1830
        %v1832 = vpop.f32.mrb[0].mxu0
        %v1833 = vpop.f32.mrb[0].mxu0
        %v1834 = vadd.f32 %v1474, %v1833
        %v1835 = vpop.f32.mrb[0].mxu0
        %1836 = vmatprep.mubr.bf16.mxu0 0
        %1837 = vmatmul.mubr.bf16.gmra.mrb[0].mxu0 %v1424
        %v1838 = vpop.f32.mrb[0].mxu0
        %v1839 = vadd.f32 %v1474, %v1838
        %v1840 = vpop.f32.mrb[0].mxu0
        %v1841 = vpop.f32.mrb[0].mxu0
        %v1842 = vadd.f32 %v1474, %v1841
        %v1843 = vpop.f32.mrb[0].mxu0
        %1844 = vmatprep.mubr.bf16.mxu0 0
        %1845 = vmatmul.mubr.bf16.gmra.mrb[0].mxu0 %v1425
        %v1846 = vpop.f32.mrb[0].mxu0
        %v1847 = vadd.f32 %v1474, %v1846
        %v1848 = vpop.f32.mrb[0].mxu0
        %v1849 = vpop.f32.mrb[0].mxu0
        %v1850 = vadd.f32 %v1474, %v1849
        %v1851 = vpop.f32.mrb[0].mxu0
        %1852 = vmatprep.mubr.bf16.mxu0 0
        %1853 = vmatmul.mubr.bf16.gmra.mrb[0].mxu0 %v1426
        %v1854 = vpop.f32.mrb[0].mxu0
        %v1855 = vadd.f32 %v1474, %v1854
        %v1856 = vpop.f32.mrb[0].mxu0
        %v1857 = vpop.f32.mrb[0].mxu0
        %v1858 = vadd.f32 %v1474, %v1857
        %v1859 = vpop.f32.mrb[0].mxu0
        %1860 = vmatprep.mubr.bf16.mxu0 0
        %1861 = vmatmul.mubr.bf16.gmra.mrb[0].mxu0 %v1427
        %v1862 = vpop.f32.mrb[0].mxu0
        %v1863 = vadd.f32 %v1474, %v1862
        %v1864 = vpop.f32.mrb[0].mxu0
        %v1865 = vpop.f32.mrb[0].mxu0
        %v1866 = vadd.f32 %v1474, %v1865
        %v1867 = vpop.f32.mrb[0].mxu0
        %1868 = vmatprep.mubr.bf16.mxu0 0
        %1869 = vmatmul.mubr.bf16.gmra.mrb[0].mxu0 %v1428
        %v1870 = vpop.f32.mrb[0].mxu0
        %v1871 = vadd.f32 %v1474, %v1870
        %v1872 = vpop.f32.mrb[0].mxu0
        %v1873 = vpop.f32.mrb[0].mxu0
        %v1874 = vadd.f32 %v1474, %v1873
        %v1875 = vpop.f32.mrb[0].mxu0
        %1876 = vmatprep.mubr.bf16.mxu0 0
        %1877 = vmatmul.mubr.bf16.gmra.mrb[0].mxu0 %v1429
        %v1878 = vpop.f32.mrb[0].mxu0
        %v1879 = vadd.f32 %v1474, %v1878
        %v1880 = vpop.f32.mrb[0].mxu0
        %v1881 = vpop.f32.mrb[0].mxu0
        %v1882 = vadd.f32 %v1474, %v1881
        %v1883 = vpop.f32.mrb[0].mxu0
        %1884 = vmatprep.mubr.bf16.mxu0 0
        %1885 = vmatmul.mubr.bf16.gmra.mrb[0].mxu0 %v1430
        %v1886 = vpop.f32.mrb[0].mxu0
        %v1887 = vadd.f32 %v1474, %v1886
        %v1888 = vpop.f32.mrb[0].mxu0
        %v1889 = vpop.f32.mrb[0].mxu0
        %v1890 = vadd.f32 %v1474, %v1889
        %v1891 = vpop.f32.mrb[0].mxu0
        %1892 = vmatprep.mubr.bf16.mxu0 0
        %1893 = vmatmul.mubr.bf16.gmra.mrb[0].mxu0 %v1431
        %v1894 = vpop.f32.mrb[0].mxu0
        %v1895 = vadd.f32 %v1474, %v1894
        %v1896 = vpop.f32.mrb[0].mxu0
        %v1897 = vpop.f32.mrb[0].mxu0
        %v1898 = vadd.f32 %v1474, %v1897
        %v1899 = vpop.f32.mrb[0].mxu0
        %1900 = vmatprep.mubr.bf16.mxu0 0
        %1901 = vmatmul.mubr.bf16.gmra.mrb[0].mxu0 %v1432
        %v1902 = vpop.f32.mrb[0].mxu0
        %v1903 = vadd.f32 %v1474, %v1902
        %v1904 = vpop.f32.mrb[0].mxu0
        %v1905 = vpop.f32.mrb[0].mxu0
        %v1906 = vadd.f32 %v1474, %v1905
        %v1907 = vpop.f32.mrb[0].mxu0
        %1908 = vmatprep.mubr.bf16.mxu0 0
        %1909 = vmatmul.mubr.bf16.gmra.mrb[0].mxu0 %v1433
        %v1910 = vpop.f32.mrb[0].mxu0
        %v1911 = vadd.f32 %v1474, %v1910
        %v1912 = vpop.f32.mrb[0].mxu0
        %v1913 = vpop.f32.mrb[0].mxu0
        %v1914 = vadd.f32 %v1474, %v1913
        %v1915 = vpop.f32.mrb[0].mxu0
        %1916 = vmatprep.mubr.bf16.mxu0 0
        %1917 = vmatmul.mubr.bf16.gmra.mrb[0].mxu0 %v1434
        %v1918 = vpop.f32.mrb[0].mxu0
        %v1919 = vadd.f32 %v1474, %v1918
        %v1920 = vpop.f32.mrb[0].mxu0
        %v1921 = vpop.f32.mrb[0].mxu0
        %v1922 = vadd.f32 %v1474, %v1921
        %v1923 = vpop.f32.mrb[0].mxu0
        %1924 = vmatprep.mubr.bf16.mxu0 0
        %1925 = vmatmul.mubr.bf16.gmra.mrb[0].mxu0 %v1435
        %v1926 = vpop.f32.mrb[0].mxu0
        %v1927 = vadd.f32 %v1474, %v1926
        %v1928 = vpop.f32.mrb[0].mxu0
        %v1929 = vpop.f32.mrb[0].mxu0
        %v1930 = vadd.f32 %v1474, %v1929
        %v1931 = vpop.f32.mrb[0].mxu0
        %1932 = vmatprep.mubr.bf16.mxu0 0
        %1933 = vmatmul.mubr.bf16.gmra.mrb[0].mxu0 %v1436
        %v1934 = vpop.f32.mrb[0].mxu0
        %v1935 = vadd.f32 %v1474, %v1934
        %v1936 = vpop.f32.mrb[0].mxu0
        %v1937 = vpop.f32.mrb[0].mxu0
        %v1938 = vadd.f32 %v1474, %v1937
        %v1939 = vpop.f32.mrb[0].mxu0
        %1940 = vmatprep.mubr.bf16.mxu0 0
        %1941 = vmatmul.mubr.bf16.gmra.mrb[0].mxu0 %v1437
        %v1942 = vpop.f32.mrb[0].mxu0
        %v1943 = vadd.f32 %v1474, %v1942
        %v1944 = vpop.f32.mrb[0].mxu0
        %v1945 = vpop.f32.mrb[0].mxu0
        %v1946 = vadd.f32 %v1474, %v1945
        %v1947 = vpop.f32.mrb[0].mxu0
        %1948 = vmatprep.mubr.bf16.mxu0 0
        %1949 = vmatmul.mubr.bf16.gmra.mrb[0].mxu0 %v1438
        %v1950 = vpop.f32.mrb[0].mxu0
        %v1951 = vadd.f32 %v1474, %v1950
        %v1952 = vpop.f32.mrb[0].mxu0
        %v1953 = vpop.f32.mrb[0].mxu0
        %v1954 = vadd.f32 %v1474, %v1953
        %v1955 = vpop.f32.mrb[0].mxu0
        %1956 = vmatprep.mubr.bf16.mxu0 0
        %1957 = vmatmul.mubr.bf16.gmra.mrb[0].mxu0 %v1439
        %v1958 = vpop.f32.mrb[0].mxu0
        %v1959 = vadd.f32 %v1474, %v1958
        %v1960 = vpop.f32.mrb[0].mxu0
        %v1961 = vpop.f32.mrb[0].mxu0
        %v1962 = vadd.f32 %v1474, %v1961
        %v1963 = vpop.f32.mrb[0].mxu0
        %1964 = vmatprep.mubr.bf16.mxu0 0
        %1965 = vmatmul.mubr.bf16.gmra.mrb[0].mxu0 %v1440
        %v1966 = vpop.f32.mrb[0].mxu0
        %v1967 = vadd.f32 %v1474, %v1966
        %v1968 = vpop.f32.mrb[0].mxu0
        %v1969 = vpop.f32.mrb[0].mxu0
        %v1970 = vadd.f32 %v1474, %v1969
        %v1971 = vpop.f32.mrb[0].mxu0
        %1972 = vmatprep.mubr.bf16.mxu0 0
        %1973 = vmatmul.mubr.bf16.gmra.mrb[0].mxu0 %v1441
        %v1974 = vpop.f32.mrb[0].mxu0
        %v1975 = vadd.f32 %v1474, %v1974
        %v1976 = vpop.f32.mrb[0].mxu0
        %v1977 = vpop.f32.mrb[0].mxu0
        %v1978 = vadd.f32 %v1474, %v1977
        %v1979 = vpop.f32.mrb[0].mxu0
        %1980 = vmatprep.mubr.bf16.mxu0 0
        %1981 = vmatmul.mubr.bf16.gmra.mrb[0].mxu0 %v1442
        %v1982 = vpop.f32.mrb[0].mxu0
        %v1983 = vadd.f32 %v1474, %v1982
        %v1984 = vpop.f32.mrb[0].mxu0
        %v1985 = vpop.f32.mrb[0].mxu0
        %v1986 = vadd.f32 %v1474, %v1985
        %v1987 = vpop.f32.mrb[0].mxu0
        %1988 = vmatprep.mubr.bf16.mxu0 0
        %1989 = vmatmul.mubr.bf16.gmra.mrb[0].mxu0 %v1443
        %v1990 = vpop.f32.mrb[0].mxu0
        %v1991 = vadd.f32 %v1474, %v1990
        %v1992 = vpop.f32.mrb[0].mxu0
        %v1993 = vpop.f32.mrb[0].mxu0
        %v1994 = vadd.f32 %v1474, %v1993
        %v1995 = vpop.f32.mrb[0].mxu0
        %1996 = vmatprep.mubr.bf16.mxu0 0
        %1997 = vmatmul.mubr.bf16.gmra.mrb[0].mxu0 %v1444
        %v1998 = vpop.f32.mrb[0].mxu0
        %v1999 = vadd.f32 %v1474, %v1998
        %v2000 = vpop.f32.mrb[0].mxu0
        %v2001 = vpop.f32.mrb[0].mxu0
        %v2002 = vadd.f32 %v1474, %v2001
        %v2003 = vpop.f32.mrb[0].mxu0
        %2004 = vmatprep.mubr.bf16.mxu0 0
        %2005 = vmatmul.mubr.bf16.gmra.mrb[0].mxu0 %v1445
        %v2006 = vpop.f32.mrb[0].mxu0
        %v2007 = vadd.f32 %v1474, %v2006
        %v2008 = vpop.f32.mrb[0].mxu0
        %v2009 = vpop.f32.mrb[0].mxu0
        %v2010 = vadd.f32 %v1474, %v2009
        %v2011 = vpop.f32.mrb[0].mxu0
        %2012 = vmatprep.mubr.bf16.mxu0 0
        %2013 = vmatmul.mubr.bf16.gmra.mrb[0].mxu0 %v1446
        %v2014 = vpop.f32.mrb[0].mxu0
        %v2015 = vadd.f32 %v1474, %v2014
        %v2016 = vpop.f32.mrb[0].mxu0
        %v2017 = vpop.f32.mrb[0].mxu0
        %v2018 = vadd.f32 %v1474, %v2017
        %v2019 = vpop.f32.mrb[0].mxu0
        %2020 = vmatprep.mubr.bf16.mxu0 0
        %2021 = vmatmul.mubr.bf16.gmra.mrb[0].mxu0 %v1447
        %v2022 = vpop.f32.mrb[0].mxu0
        %v2023 = vadd.f32 %v1474, %v2022
        %v2024 = vpop.f32.mrb[0].mxu0
        %v2025 = vpop.f32.mrb[0].mxu0
        %v2026 = vadd.f32 %v1474, %v2025
        %v2027 = vpop.f32.mrb[0].mxu0
        %2028 = vmatprep.mubr.bf16.mxu0 0
        %2029 = vmatmul.mubr.bf16.gmra.mrb[0].mxu0 %v1448
        %v2030 = vpop.f32.mrb[0].mxu0
        %v2031 = vadd.f32 %v1474, %v2030
        %v2032 = vpop.f32.mrb[0].mxu0
        %v2033 = vpop.f32.mrb[0].mxu0
        %v2034 = vadd.f32 %v1474, %v2033
        %v2035 = vpop.f32.mrb[0].mxu0
        %2036 = vmatprep.mubr.bf16.mxu0 0
        %2037 = vmatmul.mubr.bf16.gmra.mrb[0].mxu0 %v1449
        %v2038 = vpop.f32.mrb[0].mxu0
        %v2039 = vadd.f32 %v1474, %v2038
        %v2040 = vpop.f32.mrb[0].mxu0
        %v2041 = vpop.f32.mrb[0].mxu0
        %v2042 = vadd.f32 %v1474, %v2041
        %v2043 = vpop.f32.mrb[0].mxu0
        %2044 = vmatprep.mubr.bf16.mxu0 0
        %2045 = vmatmul.mubr.bf16.gmra.mrb[0].mxu0 %v1450
        %v2046 = vpop.f32.mrb[0].mxu0
        %v2047 = vadd.f32 %v1474, %v2046
        %v2048 = vpop.f32.mrb[0].mxu0
        %v2049 = vpop.f32.mrb[0].mxu0
        %v2050 = vadd.f32 %v1474, %v2049
        %v2051 = vpop.f32.mrb[0].mxu0
        %2052 = vmatprep.mubr.bf16.mxu0 0
        %2053 = vmatmul.mubr.bf16.gmra.mrb[0].mxu0 %v1451
        %v2054 = vpop.f32.mrb[0].mxu0
        %v2055 = vadd.f32 %v1474, %v2054
        %v2056 = vpop.f32.mrb[0].mxu0
        %v2057 = vpop.f32.mrb[0].mxu0
        %v2058 = vadd.f32 %v1474, %v2057
        %v2059 = vpop.f32.mrb[0].mxu0
        %2060 = vmatprep.mubr.bf16.mxu0 0
        %2061 = vmatmul.mubr.bf16.gmra.mrb[0].mxu0 %v1452
        %v2062 = vpop.f32.mrb[0].mxu0
        %v2063 = vadd.f32 %v1474, %v2062
        %v2064 = vpop.f32.mrb[0].mxu0
        %v2065 = vpop.f32.mrb[0].mxu0
        %v2066 = vadd.f32 %v1474, %v2065
        %v2067 = vpop.f32.mrb[0].mxu0
        %2068 = vdwg.mxu0
        %v2069 = vmax.f32 %v1559, 0.0
        %v2070 = vmax.f32 %v1562, 0.0
        %v2071 = vmax.f32 %v1567, 0.0
        %v2072 = vmax.f32 %v1570, 0.0
        %v2073 = vmax.f32 %v1575, 0.0
        %v2074 = vmax.f32 %v1578, 0.0
        %v2075 = vmax.f32 %v1583, 0.0
        %v2076 = vmax.f32 %v1586, 0.0
        %v2077 = vmax.f32 %v1591, 0.0
        %v2078 = vmax.f32 %v1594, 0.0
        %v2079 = vmax.f32 %v1599, 0.0
        %v2080 = vmax.f32 %v1602, 0.0
        %v2081 = vmax.f32 %v1607, 0.0
        %v2082 = vmax.f32 %v1610, 0.0
        %v2083 = vmax.f32 %v1615, 0.0
        %v2084 = vmax.f32 %v1618, 0.0
        %v2085 = vmax.f32 %v1623, 0.0
        %v2086 = vmax.f32 %v1626, 0.0
        %v2087 = vmax.f32 %v1631, 0.0
        %v2088 = vmax.f32 %v1634, 0.0
        %v2089 = vmax.f32 %v1639, 0.0
        %v2090 = vmax.f32 %v1642, 0.0
        %v2091 = vmax.f32 %v1647, 0.0
        %v2092 = vmax.f32 %v1650, 0.0
        %v2093 = vmax.f32 %v1655, 0.0
        %v2094 = vmax.f32 %v1658, 0.0
        %v2095 = vmax.f32 %v1663, 0.0
        %v2096 = vmax.f32 %v1666, 0.0
        %v2097 = vmax.f32 %v1671, 0.0
        %v2098 = vmax.f32 %v1674, 0.0
        %v2099 = vmax.f32 %v1679, 0.0
        %v2100 = vmax.f32 %v1682, 0.0
        %v2101 = vmax.f32 %v1687, 0.0
        %v2102 = vmax.f32 %v1690, 0.0
        %v2103 = vmax.f32 %v1695, 0.0
        %v2104 = vmax.f32 %v1698, 0.0
        %v2105 = vmax.f32 %v1703, 0.0
        %v2106 = vmax.f32 %v1706, 0.0
        %v2107 = vmax.f32 %v1711, 0.0
        %v2108 = vmax.f32 %v1714, 0.0
        %v2109 = vmax.f32 %v1719, 0.0
        %v2110 = vmax.f32 %v1722, 0.0
        %v2111 = vmax.f32 %v1727, 0.0
        %v2112 = vmax.f32 %v1730, 0.0
        %v2113 = vmax.f32 %v1735, 0.0
        %v2114 = vmax.f32 %v1738, 0.0
        %v2115 = vmax.f32 %v1743, 0.0
        %v2116 = vmax.f32 %v1746, 0.0
        %v2117 = vmax.f32 %v1751, 0.0
        %v2118 = vmax.f32 %v1754, 0.0
        %v2119 = vmax.f32 %v1759, 0.0
        %v2120 = vmax.f32 %v1762, 0.0
        %v2121 = vmax.f32 %v1767, 0.0
        %v2122 = vmax.f32 %v1770, 0.0
        %v2123 = vmax.f32 %v1775, 0.0
        %v2124 = vmax.f32 %v1778, 0.0
        %v2125 = vmax.f32 %v1783, 0.0
        %v2126 = vmax.f32 %v1786, 0.0
        %v2127 = vmax.f32 %v1791, 0.0
        %v2128 = vmax.f32 %v1794, 0.0
        %v2129 = vmax.f32 %v1799, 0.0
        %v2130 = vmax.f32 %v1802, 0.0
        %v2131 = vmax.f32 %v1807, 0.0
        %v2132 = vmax.f32 %v1810, 0.0
        %v2133 = vmax.f32 %v1815, 0.0
        %v2134 = vmax.f32 %v1818, 0.0
        %v2135 = vmax.f32 %v1823, 0.0
        %v2136 = vmax.f32 %v1826, 0.0
        %v2137 = vmax.f32 %v1831, 0.0
        %v2138 = vmax.f32 %v1834, 0.0
        %v2139 = vmax.f32 %v1839, 0.0
        %v2140 = vmax.f32 %v1842, 0.0
        %v2141 = vmax.f32 %v1847, 0.0
        %v2142 = vmax.f32 %v1850, 0.0
        %v2143 = vmax.f32 %v1855, 0.0
        %v2144 = vmax.f32 %v1858, 0.0
        %v2145 = vmax.f32 %v1863, 0.0
        %v2146 = vmax.f32 %v1866, 0.0
        %v2147 = vmax.f32 %v1871, 0.0
        %v2148 = vmax.f32 %v1874, 0.0
        %v2149 = vmax.f32 %v1879, 0.0
        %v2150 = vmax.f32 %v1882, 0.0
        %v2151 = vmax.f32 %v1887, 0.0
        %v2152 = vmax.f32 %v1890, 0.0
        %v2153 = vmax.f32 %v1895, 0.0
        %v2154 = vmax.f32 %v1898, 0.0
        %v2155 = vmax.f32 %v1903, 0.0
        %v2156 = vmax.f32 %v1906, 0.0
        %v2157 = vmax.f32 %v1911, 0.0
        %v2158 = vmax.f32 %v1914, 0.0
        %v2159 = vmax.f32 %v1919, 0.0
        %v2160 = vmax.f32 %v1922, 0.0
        %v2161 = vmax.f32 %v1927, 0.0
        %v2162 = vmax.f32 %v1930, 0.0
        %v2163 = vmax.f32 %v1935, 0.0
        %v2164 = vmax.f32 %v1938, 0.0
        %v2165 = vmax.f32 %v1943, 0.0
        %v2166 = vmax.f32 %v1946, 0.0
        %v2167 = vmax.f32 %v1951, 0.0
        %v2168 = vmax.f32 %v1954, 0.0
        %v2169 = vmax.f32 %v1959, 0.0
        %v2170 = vmax.f32 %v1962, 0.0
        %v2171 = vmax.f32 %v1967, 0.0
        %v2172 = vmax.f32 %v1970, 0.0
        %v2173 = vmax.f32 %v1975, 0.0
        %v2174 = vmax.f32 %v1978, 0.0
        %v2175 = vmax.f32 %v1983, 0.0
        %v2176 = vmax.f32 %v1986, 0.0
        %v2177 = vmax.f32 %v1991, 0.0
        %v2178 = vmax.f32 %v1994, 0.0
        %v2179 = vmax.f32 %v1999, 0.0
        %v2180 = vmax.f32 %v2002, 0.0
        %v2181 = vmax.f32 %v2007, 0.0
        %v2182 = vmax.f32 %v2010, 0.0
        %v2183 = vmax.f32 %v2015, 0.0
        %v2184 = vmax.f32 %v2018, 0.0
        %v2185 = vmax.f32 %v2023, 0.0
        %v2186 = vmax.f32 %v2026, 0.0
        %v2187 = vmax.f32 %v2031, 0.0
        %v2188 = vmax.f32 %v2034, 0.0
        %v2189 = vmax.f32 %v2039, 0.0
        %v2190 = vmax.f32 %v2042, 0.0
        %v2191 = vmax.f32 %v2047, 0.0
        %v2192 = vmax.f32 %v2050, 0.0
        %v2193 = vmax.f32 %v2055, 0.0
        %v2194 = vmax.f32 %v2058, 0.0
        %v2195 = vmax.f32 %v2063, 0.0
        %v2196 = vmax.f32 %v2066, 0.0
        %v2197 = vpack.c.bf16 %v2070, %v2069
        %v2198 = vpack.c.bf16 %v2072, %v2071
        %v2199 = vpack.c.bf16 %v2074, %v2073
        %v2200 = vpack.c.bf16 %v2076, %v2075
        %v2201 = vpack.c.bf16 %v2078, %v2077
        %v2202 = vpack.c.bf16 %v2080, %v2079
        %v2203 = vpack.c.bf16 %v2082, %v2081
        %v2204 = vpack.c.bf16 %v2084, %v2083
        %v2205 = vpack.c.bf16 %v2086, %v2085
        %v2206 = vpack.c.bf16 %v2088, %v2087
        %v2207 = vpack.c.bf16 %v2090, %v2089
        %v2208 = vpack.c.bf16 %v2092, %v2091
        %v2209 = vpack.c.bf16 %v2094, %v2093
        %v2210 = vpack.c.bf16 %v2096, %v2095
        %v2211 = vpack.c.bf16 %v2098, %v2097
        %v2212 = vpack.c.bf16 %v2100, %v2099
        %v2213 = vpack.c.bf16 %v2102, %v2101
        %v2214 = vpack.c.bf16 %v2104, %v2103
        %v2215 = vpack.c.bf16 %v2106, %v2105
        %v2216 = vpack.c.bf16 %v2108, %v2107
        %v2217 = vpack.c.bf16 %v2110, %v2109
        %v2218 = vpack.c.bf16 %v2112, %v2111
        %v2219 = vpack.c.bf16 %v2114, %v2113
        %v2220 = vpack.c.bf16 %v2116, %v2115
        %v2221 = vpack.c.bf16 %v2118, %v2117
        %v2222 = vpack.c.bf16 %v2120, %v2119
        %v2223 = vpack.c.bf16 %v2122, %v2121
        %v2224 = vpack.c.bf16 %v2124, %v2123
        %v2225 = vpack.c.bf16 %v2126, %v2125
        %v2226 = vpack.c.bf16 %v2128, %v2127
        %v2227 = vpack.c.bf16 %v2130, %v2129
        %v2228 = vpack.c.bf16 %v2132, %v2131
        %v2229 = vpack.c.bf16 %v2134, %v2133
        %v2230 = vpack.c.bf16 %v2136, %v2135
        %v2231 = vpack.c.bf16 %v2138, %v2137
        %v2232 = vpack.c.bf16 %v2140, %v2139
        %v2233 = vpack.c.bf16 %v2142, %v2141
        %v2234 = vpack.c.bf16 %v2144, %v2143
        %v2235 = vpack.c.bf16 %v2146, %v2145
        %v2236 = vpack.c.bf16 %v2148, %v2147
        %v2237 = vpack.c.bf16 %v2150, %v2149
        %v2238 = vpack.c.bf16 %v2152, %v2151
        %v2239 = vpack.c.bf16 %v2154, %v2153
        %v2240 = vpack.c.bf16 %v2156, %v2155
        %v2241 = vpack.c.bf16 %v2158, %v2157
        %v2242 = vpack.c.bf16 %v2160, %v2159
        %v2243 = vpack.c.bf16 %v2162, %v2161
        %v2244 = vpack.c.bf16 %v2164, %v2163
        %v2245 = vpack.c.bf16 %v2166, %v2165
        %v2246 = vpack.c.bf16 %v2168, %v2167
        %v2247 = vpack.c.bf16 %v2170, %v2169
        %v2248 = vpack.c.bf16 %v2172, %v2171
        %v2249 = vpack.c.bf16 %v2174, %v2173
        %v2250 = vpack.c.bf16 %v2176, %v2175
        %v2251 = vpack.c.bf16 %v2178, %v2177
        %v2252 = vpack.c.bf16 %v2180, %v2179
        %v2253 = vpack.c.bf16 %v2182, %v2181
        %v2254 = vpack.c.bf16 %v2184, %v2183
        %v2255 = vpack.c.bf16 %v2186, %v2185
        %v2256 = vpack.c.bf16 %v2188, %v2187
        %v2257 = vpack.c.bf16 %v2190, %v2189
        %v2258 = vpack.c.bf16 %v2192, %v2191
        %v2259 = vpack.c.bf16 %v2194, %v2193
        %v2260 = vpack.c.bf16 %v2196, %v2195
        %v2261 = vld [vmem:[%s5] sm:$0xf]
        %v2262 = vld [vmem:[%s6] sm:$0xff]
        %2264 = vset.pattern.permute.xlu0 0
        %2265 = vperm.xlu0 %2264, %v2262
        %v2266 = vpop.permute.xlu0 %2265
        %2268 = vmatprep.subr.bf16.mxu0 0
        %2269 = vmatpush1.bf16.xpose.msra.mxu0 %v2197
        %2270 = vmatprep.subr.bf16.mxu0 0
        %2271 = vmatpush1.bf16.xpose.msra.mxu0 %v2198
        %2272 = vmatprep.subr.bf16.mxu0 0
        %2273 = vmatpush1.bf16.xpose.msra.mxu0 %v2199
        %2274 = vmatprep.subr.bf16.mxu0 0
        %2275 = vmatpush1.bf16.xpose.msra.mxu0 %v2200
        %2276 = vmatprep.subr.bf16.mxu0 0
        %2277 = vmatpush1.bf16.xpose.msra.mxu0 %v2201
        %2278 = vmatprep.subr.bf16.mxu0 0
        %2279 = vmatpush1.bf16.xpose.msra.mxu0 %v2202
        %2280 = vmatprep.subr.bf16.mxu0 0
        %2281 = vmatpush1.bf16.xpose.msra.mxu0 %v2203
        %2282 = vmatprep.subr.bf16.mxu0 0
        %2283 = vmatpush1.bf16.xpose.msra.mxu0 %v2204
        %2284 = vmatprep.subr.bf16.mxu0 0
        %2285 = vmatpush1.bf16.xpose.msra.mxu0 %v2205
        %2286 = vmatprep.subr.bf16.mxu0 0
        %2287 = vmatpush1.bf16.xpose.msra.mxu0 %v2206
        %2288 = vmatprep.subr.bf16.mxu0 0
        %2289 = vmatpush1.bf16.xpose.msra.mxu0 %v2207
        %2290 = vmatprep.subr.bf16.mxu0 0
        %2291 = vmatpush1.bf16.xpose.msra.mxu0 %v2208
        %2292 = vmatprep.subr.bf16.mxu0 0
        %2293 = vmatpush1.bf16.xpose.msra.mxu0 %v2209
        %2294 = vmatprep.subr.bf16.mxu0 0
        %2295 = vmatpush1.bf16.xpose.msra.mxu0 %v2210
        %2296 = vmatprep.subr.bf16.mxu0 0
        %2297 = vmatpush1.bf16.xpose.msra.mxu0 %v2211
        %2298 = vmatprep.subr.bf16.mxu0 0
        %2299 = vmatpush1.bf16.xpose.msra.mxu0 %v2212
        %2300 = vmatprep.mubr.bf16.mxu0 0
        %2301 = vmatmul.mubr.bf16.gmra.mrb[0].mxu0 %v2261
        %v2302 = vpop.f32.mrb[0].mxu0
        %v2303 = vadd.f32 %v2266, %v2302
        %v2304 = vpop.f32.mrb[0].mxu0
        %v2305 = vadd.f32 %v2266, %v2304
        %v2306 = vpop.f32.mrb[0].mxu0
        %v2307 = vpop.f32.mrb[0].mxu0
        %2308 = vdwg.mxu0
        %2309 = vmatprep.subr.bf16.mxu0 0
        %2310 = vmatpush1.bf16.xpose.msra.mxu0 %v2213
        %2311 = vmatprep.subr.bf16.mxu0 0
        %2312 = vmatpush1.bf16.xpose.msra.mxu0 %v2214
        %2313 = vmatprep.subr.bf16.mxu0 0
        %2314 = vmatpush1.bf16.xpose.msra.mxu0 %v2215
        %2315 = vmatprep.subr.bf16.mxu0 0
        %2316 = vmatpush1.bf16.xpose.msra.mxu0 %v2216
        %2317 = vmatprep.subr.bf16.mxu0 0
        %2318 = vmatpush1.bf16.xpose.msra.mxu0 %v2217
        %2319 = vmatprep.subr.bf16.mxu0 0
        %2320 = vmatpush1.bf16.xpose.msra.mxu0 %v2218
        %2321 = vmatprep.subr.bf16.mxu0 0
        %2322 = vmatpush1.bf16.xpose.msra.mxu0 %v2219
        %2323 = vmatprep.subr.bf16.mxu0 0
        %2324 = vmatpush1.bf16.xpose.msra.mxu0 %v2220
        %2325 = vmatprep.subr.bf16.mxu0 0
        %2326 = vmatpush1.bf16.xpose.msra.mxu0 %v2221
        %2327 = vmatprep.subr.bf16.mxu0 0
        %2328 = vmatpush1.bf16.xpose.msra.mxu0 %v2222
        %2329 = vmatprep.subr.bf16.mxu0 0
        %2330 = vmatpush1.bf16.xpose.msra.mxu0 %v2223
        %2331 = vmatprep.subr.bf16.mxu0 0
        %2332 = vmatpush1.bf16.xpose.msra.mxu0 %v2224
        %2333 = vmatprep.subr.bf16.mxu0 0
        %2334 = vmatpush1.bf16.xpose.msra.mxu0 %v2225
        %2335 = vmatprep.subr.bf16.mxu0 0
        %2336 = vmatpush1.bf16.xpose.msra.mxu0 %v2226
        %2337 = vmatprep.subr.bf16.mxu0 0
        %2338 = vmatpush1.bf16.xpose.msra.mxu0 %v2227
        %2339 = vmatprep.subr.bf16.mxu0 0
        %2340 = vmatpush1.bf16.xpose.msra.mxu0 %v2228
        %2341 = vmatprep.mubr.bf16.mxu0 0
        %2342 = vmatmul.mubr.bf16.gmra.mrb[0].mxu0 %v2261
        %v2343 = vpop.f32.mrb[0].mxu0
        %v2344 = vadd.f32 %v2266, %v2343
        %v2345 = vpop.f32.mrb[0].mxu0
        %v2346 = vadd.f32 %v2266, %v2345
        %v2347 = vpop.f32.mrb[0].mxu0
        %v2348 = vpop.f32.mrb[0].mxu0
        %2349 = vdwg.mxu0
        %2350 = vmatprep.subr.bf16.mxu0 0
        %2351 = vmatpush1.bf16.xpose.msra.mxu0 %v2229
        %2352 = vmatprep.subr.bf16.mxu0 0
        %2353 = vmatpush1.bf16.xpose.msra.mxu0 %v2230
        %2354 = vmatprep.subr.bf16.mxu0 0
        %2355 = vmatpush1.bf16.xpose.msra.mxu0 %v2231
        %2356 = vmatprep.subr.bf16.mxu0 0
        %2357 = vmatpush1.bf16.xpose.msra.mxu0 %v2232
        %2358 = vmatprep.subr.bf16.mxu0 0
        %2359 = vmatpush1.bf16.xpose.msra.mxu0 %v2233
        %2360 = vmatprep.subr.bf16.mxu0 0
        %2361 = vmatpush1.bf16.xpose.msra.mxu0 %v2234
        %2362 = vmatprep.subr.bf16.mxu0 0
        %2363 = vmatpush1.bf16.xpose.msra.mxu0 %v2235
        %2364 = vmatprep.subr.bf16.mxu0 0
        %2365 = vmatpush1.bf16.xpose.msra.mxu0 %v2236
        %2366 = vmatprep.subr.bf16.mxu0 0
        %2367 = vmatpush1.bf16.xpose.msra.mxu0 %v2237
        %2368 = vmatprep.subr.bf16.mxu0 0
        %2369 = vmatpush1.bf16.xpose.msra.mxu0 %v2238
        %2370 = vmatprep.subr.bf16.mxu0 0
        %2371 = vmatpush1.bf16.xpose.msra.mxu0 %v2239
        %2372 = vmatprep.subr.bf16.mxu0 0
        %2373 = vmatpush1.bf16.xpose.msra.mxu0 %v2240
        %2374 = vmatprep.subr.bf16.mxu0 0
        %2375 = vmatpush1.bf16.xpose.msra.mxu0 %v2241
        %2376 = vmatprep.subr.bf16.mxu0 0
        %2377 = vmatpush1.bf16.xpose.msra.mxu0 %v2242
        %2378 = vmatprep.subr.bf16.mxu0 0
        %2379 = vmatpush1.bf16.xpose.msra.mxu0 %v2243
        %2380 = vmatprep.subr.bf16.mxu0 0
        %2381 = vmatpush1.bf16.xpose.msra.mxu0 %v2244
        %2382 = vmatprep.mubr.bf16.mxu0 0
        %2383 = vmatmul.mubr.bf16.gmra.mrb[0].mxu0 %v2261
        %v2384 = vpop.f32.mrb[0].mxu0
        %v2385 = vadd.f32 %v2266, %v2384
        %v2386 = vpop.f32.mrb[0].mxu0
        %v2387 = vadd.f32 %v2266, %v2386
        %v2388 = vpop.f32.mrb[0].mxu0
        %v2389 = vpop.f32.mrb[0].mxu0
        %2390 = vdwg.mxu0
        %2391 = vmatprep.subr.bf16.mxu0 0
        %2392 = vmatpush1.bf16.xpose.msra.mxu0 %v2245
        %2393 = vmatprep.subr.bf16.mxu0 0
        %2394 = vmatpush1.bf16.xpose.msra.mxu0 %v2246
        %2395 = vmatprep.subr.bf16.mxu0 0
        %2396 = vmatpush1.bf16.xpose.msra.mxu0 %v2247
        %2397 = vmatprep.subr.bf16.mxu0 0
        %2398 = vmatpush1.bf16.xpose.msra.mxu0 %v2248
        %2399 = vmatprep.subr.bf16.mxu0 0
        %2400 = vmatpush1.bf16.xpose.msra.mxu0 %v2249
        %2401 = vmatprep.subr.bf16.mxu0 0
        %2402 = vmatpush1.bf16.xpose.msra.mxu0 %v2250
        %2403 = vmatprep.subr.bf16.mxu0 0
        %2404 = vmatpush1.bf16.xpose.msra.mxu0 %v2251
        %2405 = vmatprep.subr.bf16.mxu0 0
        %2406 = vmatpush1.bf16.xpose.msra.mxu0 %v2252
        %2407 = vmatprep.subr.bf16.mxu0 0
        %2408 = vmatpush1.bf16.xpose.msra.mxu0 %v2253
        %2409 = vmatprep.subr.bf16.mxu0 0
        %2410 = vmatpush1.bf16.xpose.msra.mxu0 %v2254
        %2411 = vmatprep.subr.bf16.mxu0 0
        %2412 = vmatpush1.bf16.xpose.msra.mxu0 %v2255
        %2413 = vmatprep.subr.bf16.mxu0 0
        %2414 = vmatpush1.bf16.xpose.msra.mxu0 %v2256
        %2415 = vmatprep.subr.bf16.mxu0 0
        %2416 = vmatpush1.bf16.xpose.msra.mxu0 %v2257
        %2417 = vmatprep.subr.bf16.mxu0 0
        %2418 = vmatpush1.bf16.xpose.msra.mxu0 %v2258
        %2419 = vmatprep.subr.bf16.mxu0 0
        %2420 = vmatpush1.bf16.xpose.msra.mxu0 %v2259
        %2421 = vmatprep.subr.bf16.mxu0 0
        %2422 = vmatpush1.bf16.xpose.msra.mxu0 %v2260
        %2423 = vmatprep.mubr.bf16.mxu0 0
        %2424 = vmatmul.mubr.bf16.gmra.mrb[0].mxu0 %v2261
        %v2425 = vpop.f32.mrb[0].mxu0
        %v2426 = vadd.f32 %v2266, %v2425
        %v2427 = vpop.f32.mrb[0].mxu0
        %v2428 = vadd.f32 %v2266, %v2427
        %v2429 = vpop.f32.mrb[0].mxu0
        %v2430 = vpop.f32.mrb[0].mxu0
        %2431 = vdwg.mxu0
        %v2432 = vrot.slane %v2303, 4
        %v2433 = vmax.f32 %v2303, %v2432
        %v2434 = vrot.slane %v2433, 2
        %v2435 = vmax.f32 %v2433, %v2434
        %v2436 = vrot.slane %v2435, 1
        %v2437 = vmax.f32 %v2435, %v2436
        %v2438 = vrot.slane %v2305, 4
        %v2439 = vmax.f32 %v2305, %v2438
        %v2440 = vrot.slane %v2439, 2
        %v2441 = vmax.f32 %v2439, %v2440
        %v2442 = vrot.slane %v2441, 1
        %v2443 = vmax.f32 %v2441, %v2442
        %v2444 = vrot.slane %v2344, 4
        %v2445 = vmax.f32 %v2344, %v2444
        %v2446 = vrot.slane %v2445, 2
        %v2447 = vmax.f32 %v2445, %v2446
        %v2448 = vrot.slane %v2447, 1
        %v2449 = vmax.f32 %v2447, %v2448
        %v2450 = vrot.slane %v2346, 4
        %v2451 = vmax.f32 %v2346, %v2450
        %v2452 = vrot.slane %v2451, 2
        %v2453 = vmax.f32 %v2451, %v2452
        %v2454 = vrot.slane %v2453, 1
        %v2455 = vmax.f32 %v2453, %v2454
        %v2456 = vrot.slane %v2385, 4
        %v2457 = vmax.f32 %v2385, %v2456
        %v2458 = vrot.slane %v2457, 2
        %v2459 = vmax.f32 %v2457, %v2458
        %v2460 = vrot.slane %v2459, 1
        %v2461 = vmax.f32 %v2459, %v2460
        %v2462 = vrot.slane %v2387, 4
        %v2463 = vmax.f32 %v2387, %v2462
        %v2464 = vrot.slane %v2463, 2
        %v2465 = vmax.f32 %v2463, %v2464
        %v2466 = vrot.slane %v2465, 1
        %v2467 = vmax.f32 %v2465, %v2466
        %v2468 = vrot.slane %v2426, 4
        %v2469 = vmax.f32 %v2426, %v2468
        %v2470 = vrot.slane %v2469, 2
        %v2471 = vmax.f32 %v2469, %v2470
        %v2472 = vrot.slane %v2471, 1
        %v2473 = vmax.f32 %v2471, %v2472
        %v2474 = vrot.slane %v2428, 4
        %v2475 = vmax.f32 %v2428, %v2474
        %v2476 = vrot.slane %v2475, 2
        %v2477 = vmax.f32 %v2475, %v2476
        %v2478 = vrot.slane %v2477, 1
        %v2479 = vmax.f32 %v2477, %v2478
        %vm2480 = vcmp.eq.f32.partialorder %v2303, %v2437
        %vm2481 = vcmp.eq.f32.partialorder %v2305, %v2443
        %vm2482 = vcmp.eq.f32.partialorder %v2344, %v2449
        %vm2483 = vcmp.eq.f32.partialorder %v2346, %v2455
        %vm2484 = vcmp.eq.f32.partialorder %v2385, %v2461
        %vm2485 = vcmp.eq.f32.partialorder %v2387, %v2467
        %vm2486 = vcmp.eq.f32.partialorder %v2426, %v2473
        %vm2487 = vcmp.eq.f32.partialorder %v2428, %v2479
        %v2488 = vlaneseq
        %v2489 = vshrl.u32 %v2488, 7
        %v2490 = vsel %vm2480, %v2489, 8
        %v2491 = vsel %vm2481, %v2489, 8
        %v2492 = vsel %vm2482, %v2489, 8
        %v2493 = vsel %vm2483, %v2489, 8
        %v2494 = vsel %vm2484, %v2489, 8
        %v2495 = vsel %vm2485, %v2489, 8
        %v2496 = vsel %vm2486, %v2489, 8
        %v2497 = vsel %vm2487, %v2489, 8
        %v2498 = vrot.slane %v2490, 4
        %vm2499 = vcmp.lt.s32.totalorder %v2490, %v2498
        %v2500 = vsel %vm2499, %v2490, %v2498
        %v2501 = vrot.slane %v2500, 2
        %vm2502 = vcmp.lt.s32.totalorder %v2500, %v2501
        %v2503 = vsel %vm2502, %v2500, %v2501
        %v2504 = vrot.slane %v2503, 1
        %vm2505 = vcmp.lt.s32.totalorder %v2503, %v2504
        %v2506 = vsel %vm2505, %v2503, %v2504
        %v2507 = vrot.slane %v2491, 4
        %vm2508 = vcmp.lt.s32.totalorder %v2491, %v2507
        %v2509 = vsel %vm2508, %v2491, %v2507
        %v2510 = vrot.slane %v2509, 2
        %vm2511 = vcmp.lt.s32.totalorder %v2509, %v2510
        %v2512 = vsel %vm2511, %v2509, %v2510
        %v2513 = vrot.slane %v2512, 1
        %vm2514 = vcmp.lt.s32.totalorder %v2512, %v2513
        %v2515 = vsel %vm2514, %v2512, %v2513
        %v2516 = vrot.slane %v2492, 4
        %vm2517 = vcmp.lt.s32.totalorder %v2492, %v2516
        %v2518 = vsel %vm2517, %v2492, %v2516
        %v2519 = vrot.slane %v2518, 2
        %vm2520 = vcmp.lt.s32.totalorder %v2518, %v2519
        %v2521 = vsel %vm2520, %v2518, %v2519
        %v2522 = vrot.slane %v2521, 1
        %vm2523 = vcmp.lt.s32.totalorder %v2521, %v2522
        %v2524 = vsel %vm2523, %v2521, %v2522
        %v2525 = vrot.slane %v2493, 4
        %vm2526 = vcmp.lt.s32.totalorder %v2493, %v2525
        %v2527 = vsel %vm2526, %v2493, %v2525
        %v2528 = vrot.slane %v2527, 2
        %vm2529 = vcmp.lt.s32.totalorder %v2527, %v2528
        %v2530 = vsel %vm2529, %v2527, %v2528
        %v2531 = vrot.slane %v2530, 1
        %vm2532 = vcmp.lt.s32.totalorder %v2530, %v2531
        %v2533 = vsel %vm2532, %v2530, %v2531
        %v2534 = vrot.slane %v2494, 4
        %vm2535 = vcmp.lt.s32.totalorder %v2494, %v2534
        %v2536 = vsel %vm2535, %v2494, %v2534
        %v2537 = vrot.slane %v2536, 2
        %vm2538 = vcmp.lt.s32.totalorder %v2536, %v2537
        %v2539 = vsel %vm2538, %v2536, %v2537
        %v2540 = vrot.slane %v2539, 1
        %vm2541 = vcmp.lt.s32.totalorder %v2539, %v2540
        %v2542 = vsel %vm2541, %v2539, %v2540
        %v2543 = vrot.slane %v2495, 4
        %vm2544 = vcmp.lt.s32.totalorder %v2495, %v2543
        %v2545 = vsel %vm2544, %v2495, %v2543
        %v2546 = vrot.slane %v2545, 2
        %vm2547 = vcmp.lt.s32.totalorder %v2545, %v2546
        %v2548 = vsel %vm2547, %v2545, %v2546
        %v2549 = vrot.slane %v2548, 1
        %vm2550 = vcmp.lt.s32.totalorder %v2548, %v2549
        %v2551 = vsel %vm2550, %v2548, %v2549
        %v2552 = vrot.slane %v2496, 4
        %vm2553 = vcmp.lt.s32.totalorder %v2496, %v2552
        %v2554 = vsel %vm2553, %v2496, %v2552
        %v2555 = vrot.slane %v2554, 2
        %vm2556 = vcmp.lt.s32.totalorder %v2554, %v2555
        %v2557 = vsel %vm2556, %v2554, %v2555
        %v2558 = vrot.slane %v2557, 1
        %vm2559 = vcmp.lt.s32.totalorder %v2557, %v2558
        %v2560 = vsel %vm2559, %v2557, %v2558
        %v2561 = vrot.slane %v2497, 4
        %vm2562 = vcmp.lt.s32.totalorder %v2497, %v2561
        %v2563 = vsel %vm2562, %v2497, %v2561
        %v2564 = vrot.slane %v2563, 2
        %vm2565 = vcmp.lt.s32.totalorder %v2563, %v2564
        %v2566 = vsel %vm2565, %v2563, %v2564
        %v2567 = vrot.slane %v2566, 1
        %vm2568 = vcmp.lt.s32.totalorder %v2566, %v2567
        %v2569 = vsel %vm2568, %v2566, %v2567
        %v2570 = vld [vmem:[%s7] sm:$0xff]
        %2571 = vset.pattern.permute.xlu0 0
        %2572 = vperm.xlu0 %2571, %v2570
        %v2573 = vpop.permute.xlu0 %2572
        %vm2574 = vcmp.eq.s32.totalorder %v2489, %v2506
        %vm2575 = vcmp.eq.s32.totalorder %v2489, %v2515
        %vm2576 = vcmp.eq.s32.totalorder %v2489, %v2524
        %vm2577 = vcmp.eq.s32.totalorder %v2489, %v2533
        %vm2578 = vcmp.eq.s32.totalorder %v2489, %v2542
        %vm2579 = vcmp.eq.s32.totalorder %v2489, %v2551
        %vm2580 = vcmp.eq.s32.totalorder %v2489, %v2560
        %vm2581 = vcmp.eq.s32.totalorder %v2489, %v2569
        %v2582 = vsel %vm2574, %v2573, 0
        %v2583 = vsel %vm2575, %v2573, 0
        %v2584 = vsel %vm2576, %v2573, 0
        %v2585 = vsel %vm2577, %v2573, 0
        %v2586 = vsel %vm2578, %v2573, 0
        %v2587 = vsel %vm2579, %v2573, 0
        %v2588 = vsel %vm2580, %v2573, 0
        %v2589 = vsel %vm2581, %v2573, 0
        %v2590 = vrot.slane %v2582, 4
        %v2591 = vadd.s32 %v2582, %v2590
        %v2592 = vrot.slane %v2591, 2
        %v2593 = vadd.s32 %v2591, %v2592
        %v2594 = vrot.slane %v2593, 1
        %v2595 = vadd.s32 %v2593, %v2594
        %v2596 = vrot.slane %v2583, 4
        %v2597 = vadd.s32 %v2583, %v2596
        %v2598 = vrot.slane %v2597, 2
        %v2599 = vadd.s32 %v2597, %v2598
        %v2600 = vrot.slane %v2599, 1
        %v2601 = vadd.s32 %v2599, %v2600
        %v2602 = vrot.slane %v2584, 4
        %v2603 = vadd.s32 %v2584, %v2602
        %v2604 = vrot.slane %v2603, 2
        %v2605 = vadd.s32 %v2603, %v2604
        %v2606 = vrot.slane %v2605, 1
        %v2607 = vadd.s32 %v2605, %v2606
        %v2608 = vrot.slane %v2585, 4
        %v2609 = vadd.s32 %v2585, %v2608
        %v2610 = vrot.slane %v2609, 2
        %v2611 = vadd.s32 %v2609, %v2610
        %v2612 = vrot.slane %v2611, 1
        %v2613 = vadd.s32 %v2611, %v2612
        %v2614 = vrot.slane %v2586, 4
        %v2615 = vadd.s32 %v2586, %v2614
        %v2616 = vrot.slane %v2615, 2
        %v2617 = vadd.s32 %v2615, %v2616
        %v2618 = vrot.slane %v2617, 1
        %v2619 = vadd.s32 %v2617, %v2618
        %v2620 = vrot.slane %v2587, 4
        %v2621 = vadd.s32 %v2587, %v2620
        %v2622 = vrot.slane %v2621, 2
        %v2623 = vadd.s32 %v2621, %v2622
        %v2624 = vrot.slane %v2623, 1
        %v2625 = vadd.s32 %v2623, %v2624
        %v2626 = vrot.slane %v2588, 4
        %v2627 = vadd.s32 %v2588, %v2626
        %v2628 = vrot.slane %v2627, 2
        %v2629 = vadd.s32 %v2627, %v2628
        %v2630 = vrot.slane %v2629, 1
        %v2631 = vadd.s32 %v2629, %v2630
        %v2632 = vrot.slane %v2589, 4
        %v2633 = vadd.s32 %v2589, %v2632
        %v2634 = vrot.slane %v2633, 2
        %v2635 = vadd.s32 %v2633, %v2634
        %v2636 = vrot.slane %v2635, 1
        %v2637 = vadd.s32 %v2635, %v2636
        %v2638 = vcombine.low %v2595, %v2601
        %v2639 = vcombine.low %v2607, %v2613
        %v2640 = vcombine.low %v2619, %v2625
        %v2641 = vcombine.low %v2631, %v2637
        %v2643 = vunpack.c.l.s4 1966171168
        %v2644 = vunpack.c.0.s8 %v2643
        %v2645 = vlaneseq
        %v2646 = vshrl.u32 %v2645, 7
        %v2647 = vsub.s32 %v2644, %v2646
        %v2648 = vrot.slane %v2638, %v2647
        %v2650 = vunpack.c.l.s4 1966171168
        %v2651 = vunpack.c.0.s8 %v2650
        %v2652 = vlaneseq
        %v2653 = vshrl.u32 %v2652, 7
        %v2654 = vsub.s32 %v2651, %v2653
        %v2655 = vrot.slane %v2639, %v2654
        %v2657 = vunpack.c.l.s4 1966171168
        %v2658 = vunpack.c.0.s8 %v2657
        %v2659 = vlaneseq
        %v2660 = vshrl.u32 %v2659, 7
        %v2661 = vsub.s32 %v2658, %v2660
        %v2662 = vrot.slane %v2640, %v2661
        %v2664 = vunpack.c.l.s4 1966171168
        %v2665 = vunpack.c.0.s8 %v2664
        %v2666 = vlaneseq
        %v2667 = vshrl.u32 %v2666, 7
        %v2668 = vsub.s32 %v2665, %v2667
        %v2669 = vrot.slane %v2641, %v2668
        %v2670 = vcombine.low %v2648, %v2655
        %v2671 = vcombine.low %v2662, %v2669
        %v2673 = vunpack.c.l.s4 1966171168
        %v2674 = vunpack.c.0.s8 %v2673
        %v2675 = vlaneseq
        %v2676 = vshrl.u32 %v2675, 7
        %v2677 = vsub.s32 %v2674, %v2676
        %v2678 = vrot.slane %v2670, %v2677
        %v2680 = vunpack.c.l.s4 1966171168
        %v2681 = vunpack.c.0.s8 %v2680
        %v2682 = vlaneseq
        %v2683 = vshrl.u32 %v2682, 7
        %v2684 = vsub.s32 %v2681, %v2683
        %v2685 = vrot.slane %v2671, %v2684
        %v2686 = vcombine.low %v2678, %v2685
        %2687 = vst [vmem:[%s299] sm:$0xff] %v2686
        %s2688 = sand.u32 %s203, 1
        %s2689 = scalar_lea.sflag [#allocation3], %s2688
        %s2690 = sand.u32 %s203, 1
        %s2691 = smul.addr %s2690, 8
        %s2692 = scalar_lea.vmem [#allocation2], %s2691
        // Predicated region
        $region53: #{mlp_classifier_predict_padded.1} parent=51 // pred_check
          %p2693 = pneg %p213
        $region54: #{mlp_classifier_predict_padded.1} parent=51 // pred_check_branch
          %2695 = sbr.rel (%p2693) target = $region56
        $region55: #{mlp_classifier_predict_padded.1} parent=51 // pred_region
          %s2696 = smul.u32 8, %s22
          %s2698 = ssub.s32 128, 128
          %2699 = vsyncadd %s2689, %s2698
          %s2700 = smul.addr %s2696, 16
          %s2701 = scalar_lea.hbm %s8, %s2700
          %s2703 = sshll.u32 %s2692, 4
          %s2704 = int_to_ptr.vmem [resolvable:$true] %s2703
          %2706 = dma.vmem_to_hbm [thread:$0]  %s2704, 128, %s2701, %s2689
        $region56: #{mlp_classifier_predict_padded.1} parent=51 // pred_fallthru
          _
      $region52: #{mlp_classifier_predict_padded.1} parent=5 // pred_fallthru
        _
      %p2707 = scmp.le.s32.totalorder 2, %s17
      // Predicated region
      $region57: #{mlp_classifier_predict_padded.1} parent=5 // pred_check
        %p2708 = pneg %p2707
      $region58: #{mlp_classifier_predict_padded.1} parent=5 // pred_check_branch
        %2710 = sbr.rel (%p2708) target = $region60
      $region59: #{mlp_classifier_predict_padded.1} parent=5 // pred_region
        %s2711 = ssub.s32 %s17, 2
        // Predicated region
        $region61: #{mlp_classifier_predict_padded.1} parent=59 // pred_check
          %p2712 = pneg %p219
        $region62: #{mlp_classifier_predict_padded.1} parent=59 // pred_check_branch
          %2714 = sbr.rel (%p2712) target = $region64
        $region63: #{mlp_classifier_predict_padded.1} parent=59 // pred_region
          %s2715 = sand.u32 %s204, 1
          %s2716 = scalar_lea.sflag [#allocation3], %s2715
          %s2717 = sand.u32 %s204, 1
          %s2718 = smul.addr %s2717, 8
          %s2719 = scalar_lea.vmem [#allocation2], %s2718
          %2720 = dma.done %s2716, 128
        $region64: #{mlp_classifier_predict_padded.1} parent=59 // pred_fallthru
          _
      $region60: #{mlp_classifier_predict_padded.1} parent=5 // pred_fallthru
        _
    $region6: #{mlp_classifier_predict_padded.1} parent=1 // loop_footer
      %s21 = sadd.s32 1, %s17
    $region7: #{mlp_classifier_predict_padded.1} parent=1 // loop_footer_branch
      %16 = sbr.rel target = $region3
    $region8: #{mlp_classifier_predict_padded.1} parent=1 // loop_exit
      _
    %2721 = vsyncpa [#allocation3], 1
    %s2722 = scalar_lea.sflag [#allocation3], 1
    %2723 = vsyncpa %s2722, 1

</llo_original>
